<compile_context>
chip_gen: v5e
topology: v5e:2x2
jax: 0.10.0
libtpu: 0.0.40
codegen_flags: <defaults>
</compile_context>

<pallas_src>
import numpy as np
import jax
import jax.numpy as jnp
from jax.experimental import pallas as pl
from jax.experimental.pallas import tpu as pltpu


def _relation_attn_kernel(scal_ref, rel_ref, emb_ref, w_ref, bout_ref,
                          out_ref, ctx_sc):
    """One grid step = one block of `Bb` graphs (graph index on lanes).

    Shapes seen by the kernel (Bb = graphs/block, L = padded seq len,
    E = num_heads = embed_dim, head_dim == 1):
      scal_ref : (1,)            f32 SMEM  c_qk = w_q*w_k*w_fuse_qk / sqrt(E)
      rel_ref  : (1, L*L, E, Bb) bf16      c_rel*rel + b_fuse/sqrt(E)
                                           + mask*(-1e20/sqrt(E))  (all folded)
      emb_ref  : (1, L, E, Bb)   f32       padded embeddings
      w_ref    : (E, E)          f32       fc_out weight with w_v folded in
      bout_ref : (E, 1)          f32       fc_out bias
      out_ref  : (1, E, Bb)      f32       max-pooled output [h_out, b]
      ctx_sc   : (E, L*Bb)       f32 VMEM  per-query context rows (scratch)
    """
    c_qk = scal_ref[0]
    embv = emb_ref[0]                              # (L, E, Bb) — reused L times
    L, E, Bb = embv.shape

    # TODO(synk): for L beyond ~16 switch this static unroll to lax.fori_loop
    # (or a grid axis marked "arbitrary") to bound code size / live ranges.
    for q in range(L):
        # Load only this query's relation slab; keys stay on the leading
        # (major) axis so the softmax reductions are pure VPU elementwise ops.
        relq = rel_ref[0, q * L:(q + 1) * L].astype(jnp.float32)   # (L, E, Bb)
        eq = c_qk * embv[q]                                        # (E, Bb)
        logits = eq[None, :, :] * embv + relq                      # (L, E, Bb)
        m = jnp.max(logits, axis=0, keepdims=True)
        p = jnp.exp(logits - m)
        s = jnp.sum(p, axis=0)                                     # (E, Bb)
        # Normalize once on the reduced context, not on every attention weight.
        ctx_sc[:, q * Bb:(q + 1) * Bb] = jnp.sum(p * embv, axis=0) / s

    # One wide fc_out matmul over all L query positions (fills the MXU lanes
    # instead of L half-empty (E, Bb) dots).
    o_all = jnp.dot(w_ref[...], ctx_sc[...],
                    preferred_element_type=jnp.float32)            # (E, L*Bb)
    res = o_all[:, :Bb]
    for q in range(1, L):                                          # max-pool q
        res = jnp.maximum(res, o_all[:, q * Bb:(q + 1) * Bb])
    out_ref[0] = res + bout_ref[...]


def maxpool_relation_mhsa(padded_emb, padded_rel, mask, params, block_b=512):
    """Runs the Pallas kernel. padded_emb (B,L,E), padded_rel (B,L,L,E),
    mask (B,L,L) with 1.0 = padded. Returns (B, E) f32."""
    B, L, E = padded_emb.shape
    assert block_b % 128 == 0, "block_b must be a multiple of the 128 lanes"
    nblk = pl.cdiv(B, block_b)
    B_pad = nblk * block_b
    pad = B_pad - B

    # VMEM budget guard (v7x: 64 MiB physical / 32 MiB scoped default).
    # Input/output streams are double-buffered; bf16 with E<16 pads sublanes.
    per_step = (2 * L * L * max(E, 16) * block_b * 2      # relation (bf16)
                + 2 * L * max(E, 8) * block_b * 4         # embeddings (f32)
                + 2 * max(E, 8) * block_b * 4             # output (f32)
                + max(E, 8) * L * block_b * 4)            # ctx scratch (f32)
    assert per_step < 24 * 1024 * 1024, (
        "per-step VMEM too large: shrink block_b or tile the query axis")

    # Host-side scalar folding: Linear(1,1,bias=False) weights, fc_fuse, 1/sqrt(E).
    sqrt_e = float(np.sqrt(float(E)))
    c_qk = (params["w_q"][0, 0] * params["w_k"][0, 0]
            * params["w_fuse"][0, 0]) / sqrt_e
    c_rel = (params["w_r"][0, 0] * params["w_fuse"][0, 1]) / sqrt_e
    c_b = params["b_fuse"][0] / sqrt_e
    scal = jnp.reshape(c_qk, (1,)).astype(jnp.float32)

    # w_v (scalar) folded into fc_out's weight; no in-kernel transpose of fc_out.
    wout = (params["w_out"] * params["w_v"][0, 0]).astype(jnp.float32)  # (E, E)
    bout = params["b_out"].reshape(E, 1).astype(jnp.float32)

    # Fold c_rel, the fc_fuse bias and the additive mask into ONE relation
    # payload, then cast to bf16 BEFORE padding / the pack transpose so the
    # dominant host-side transpose moves 2 B/elt instead of 4 B/elt.
    neg = jnp.float32(-1e20 / sqrt_e)
    payload = (c_rel * padded_rel.astype(jnp.float32) + c_b
               + mask[..., None].astype(jnp.float32) * neg)   # (B, L, L, E) f32
    payload = payload.astype(jnp.bfloat16)
    payload = jnp.pad(payload, ((0, pad), (0, 0), (0, 0), (0, 0)))
    emb = jnp.pad(padded_emb.astype(jnp.float32), ((0, pad), (0, 0), (0, 0)))

    def pack_last(x):
        # (B_pad, d1, ..., dk) -> (nblk, d1, ..., dk, block_b): graphs -> lanes.
        perm = tuple(range(1, x.ndim)) + (0,)
        xt = jnp.transpose(x, perm).reshape(x.shape[1:] + (nblk, block_b))
        nd = xt.ndim
        return jnp.transpose(xt, (nd - 2,) + tuple(range(nd - 2)) + (nd - 1,))

    rel_t = pack_last(payload).reshape(nblk, L * L, E, block_b)   # bf16 stream
    emb_t = pack_last(emb)                                        # (nblk, L, E, Bb)

    out = pl.pallas_call(
        _relation_attn_kernel,
        out_shape=jax.ShapeDtypeStruct((nblk, E, block_b), jnp.float32),
        grid=(nblk,),
        in_specs=[
            pl.BlockSpec(memory_space=pltpu.MemorySpace.SMEM),              # c_qk
            pl.BlockSpec((1, L * L, E, block_b), lambda i: (i, 0, 0, 0)),   # relation payload
            pl.BlockSpec((1, L, E, block_b), lambda i: (i, 0, 0, 0)),       # embeddings
            pl.BlockSpec((E, E), lambda i: (0, 0)),                         # fc_out weight
            pl.BlockSpec((E, 1), lambda i: (0, 0)),                         # fc_out bias
        ],
        out_specs=pl.BlockSpec((1, E, block_b), lambda i: (i, 0, 0)),
        scratch_shapes=[pltpu.VMEM((E, L * block_b), jnp.float32)],
        compiler_params=pltpu.CompilerParams(
            dimension_semantics=("parallel",)),   # v7x: shard blocks over 2 TCs
    )(scal, rel_t, emb_t, wout, bout)

    # (nblk, E, Bb) -> (B, E): layout plumbing only.
    return out.transpose(0, 2, 1).reshape(B_pad, E)[:B]


def reference_forward(padded_emb, padded_rel, mask, params):
    """Pure-JAX mirror of the torch forward (head_dim == 1 path), for checking."""
    N, L, E = padded_emb.shape
    v = padded_emb * params["w_v"][0, 0]
    k = padded_emb * params["w_k"][0, 0]
    q = padded_emb * params["w_q"][0, 0]
    rel = padded_rel * params["w_r"][0, 0]                       # (N, Lq, Lk, E)
    energy = jnp.einsum("nqh,nkh->nqkh", q, k)
    fused = (params["w_fuse"][0, 0] * energy + params["w_fuse"][0, 1] * rel
             + params["b_fuse"][0])
    fused = jnp.where(mask[:, :, :, None] == 1.0, -1e20, fused)
    attn = jax.nn.softmax(fused / jnp.sqrt(float(E)), axis=2)
    ctx = jnp.einsum("nqkh,nkh->nqh", attn, v)                   # (N, L, E)
    out = ctx @ params["w_out"].T + params["b_out"]
    return jnp.max(out, axis=1)                                  # max_pool1d over seq


def build_padded_inputs(embeddings, batch, relations):
    """Host-side padding glue, mirroring the torch module's python loop."""
    # TODO(synk): data-dependent padding (batch.unique(), dynamic max_len) has no
    # Pallas equivalent; done on host exactly as the reference module does.
    batch = np.asarray(batch)
    uniq = np.unique(batch)
    B = len(uniq)
    E = embeddings.shape[-1]
    max_len = int(max((batch == b).sum() for b in uniq))
    padded_emb = np.zeros((B, max_len, E), np.float32)
    padded_rel = np.zeros((B, max_len, max_len, E), np.float32)
    mask = np.ones((B, max_len, max_len), np.float32)
    emb_np = np.asarray(embeddings)
    for i, b in enumerate(uniq):
        be = emb_np[batch == b]
        n = be.shape[0]
        padded_emb[i, :n] = be
        mask[i, :n, :n] = 0.0
        rel = np.asarray(relations[i])
        assert rel.shape[0] == n
        padded_rel[i, :n, :n] = rel
    return jnp.asarray(padded_emb), jnp.asarray(padded_rel), jnp.asarray(mask)


if __name__ == "__main__":
    embed_dim = 8
    num_heads = 8          # head_dim = embed_dim // num_heads = 1 (required)

    key = jax.random.PRNGKey(0)
    ks = jax.random.split(key, 10)

    params = {
        "w_v": jax.random.normal(ks[0], (1, 1), jnp.float32),
        "w_k": jax.random.normal(ks[1], (1, 1), jnp.float32),
        "w_q": jax.random.normal(ks[2], (1, 1), jnp.float32),
        "w_r": jax.random.normal(ks[3], (1, 1), jnp.float32),
        "w_fuse": jax.random.normal(ks[4], (1, 2), jnp.float32) * 0.5,
        "b_fuse": jax.random.normal(ks[5], (1,), jnp.float32) * 0.1,
        "w_out": jax.random.normal(ks[6], (embed_dim, embed_dim), jnp.float32)
                 * (1.0 / float(np.sqrt(embed_dim))),
        "b_out": jax.random.normal(ks[7], (embed_dim,), jnp.float32) * 0.1,
    }

    # 1000 small graphs (1..5 nodes each): block_b=512 -> nblk=2 grid steps,
    # so v7x can split the grid over its two TensorCores.
    n_graphs = 1000
    sizes = [(i % 5) + 1 for i in range(n_graphs)]
    batch = np.concatenate([np.full(s, i, dtype=np.int32)
                            for i, s in enumerate(sizes)])
    total_nodes = int(sum(sizes))
    embeddings = jax.random.normal(ks[8], (total_nodes, embed_dim), jnp.float32)
    rel_pool = np.asarray(
        jax.random.normal(ks[9], (n_graphs, 5, 5, embed_dim), jnp.float32))
    relations = [rel_pool[i, :s, :s, :] for i, s in enumerate(sizes)]

    padded_emb, padded_rel, mask = build_padded_inputs(embeddings, batch, relations)

    out = maxpool_relation_mhsa(padded_emb, padded_rel, mask, params, block_b=512)
    out = jax.block_until_ready(out)

    ref = reference_forward(padded_emb, padded_rel, mask, params)
    # Tolerance accounts for the bf16-streamed relation payload (~2^-9 relative
    # rounding of the fused logit term) vs. the all-f32 reference.
    if not np.allclose(np.asarray(out), np.asarray(ref), rtol=2e-2, atol=2e-2):
        raise AssertionError(
            "kernel mismatch: max abs diff "
            f"{np.abs(np.asarray(out) - np.asarray(ref)).max()}")

    print("KERNEL_OK")
</pallas_src>

<mosaic_0001>
module attributes {stable_mosaic.version = 11 : i64} {
  func.func @_relation_attn_kernel(%arg0: i32, %arg1: memref<1xf32, #tpu.memory_space<smem>>, %arg2: memref<1x25x8x512xbf16, #tpu.memory_space<vmem>>, %arg3: memref<1x5x8x512xf32, #tpu.memory_space<vmem>>, %arg4: memref<8x8xf32, #tpu.memory_space<vmem>>, %arg5: memref<8x1xf32, #tpu.memory_space<vmem>>, %arg6: memref<1x8x512xf32, #tpu.memory_space<vmem>>, %arg7: memref<8x2560xf32, #tpu.memory_space<vmem>>) attributes {dimension_semantics = [#tpu.dimension_semantics<parallel>], iteration_bounds = array<i64: 2>, scalar_prefetch = 0 : i64, scratch_operands = 1 : i64, tpu.core_type = #tpu.core_type<tc>, window_params = [{transform_indices = @transform_0, window_bounds = array<i64: 1>}, {transform_indices = @transform_1, window_bounds = array<i64: 1, 25, 8, 512>}, {transform_indices = @transform_2, window_bounds = array<i64: 1, 5, 8, 512>}, {pipeline_mode = #tpu.pipeline_mode<synchronous>, transform_indices = @transform_3, window_bounds = array<i64: 8, 8>}, {pipeline_mode = #tpu.pipeline_mode<synchronous>, transform_indices = @transform_4, window_bounds = array<i64: 8, 1>}, {transform_indices = @transform_5, window_bounds = array<i64: 1, 8, 512>}]} {
    %c0 = arith.constant 0 : index
    %0 = memref.load %arg1[%c0] : memref<1xf32, #tpu.memory_space<smem>>
    %c0_0 = arith.constant 0 : index
    %c0_1 = arith.constant 0 : index
    %c0_2 = arith.constant 0 : index
    %c0_3 = arith.constant 0 : index
    %1 = vector.load %arg3[%c0_0, %c0_1, %c0_2, %c0_3] : memref<1x5x8x512xf32, #tpu.memory_space<vmem>>, vector<1x5x8x512xf32>
    %2 = vector.shape_cast %1 : vector<1x5x8x512xf32> to vector<5x8x512xf32>
    %c0_4 = arith.constant 0 : index
    %c0_5 = arith.constant 0 : index
    %c0_6 = arith.constant 0 : index
    %c0_7 = arith.constant 0 : index
    %3 = vector.load %arg2[%c0_4, %c0_5, %c0_6, %c0_7] : memref<1x25x8x512xbf16, #tpu.memory_space<vmem>>, vector<1x5x8x512xbf16>
    %4 = vector.shape_cast %3 : vector<1x5x8x512xbf16> to vector<5x8x512xbf16>
    %5 = arith.extf %4 : vector<5x8x512xbf16> to vector<5x8x512xf32>
    %6 = vector.extract_strided_slice %2 {offsets = [0, 0, 0], sizes = [1, 8, 512], strides = [1, 1, 1]} : vector<5x8x512xf32> to vector<1x8x512xf32>
    %7 = vector.shape_cast %6 : vector<1x8x512xf32> to vector<8x512xf32>
    %8 = vector.broadcast %0 : f32 to vector<8x512xf32>
    %9 = arith.mulf %8, %7 : vector<8x512xf32>
    %10 = vector.shape_cast %9 : vector<8x512xf32> to vector<1x8x512xf32>
    %11 = vector.broadcast %10 : vector<1x8x512xf32> to vector<5x8x512xf32>
    %12 = arith.mulf %11, %2 : vector<5x8x512xf32>
    %13 = arith.addf %12, %5 : vector<5x8x512xf32>
    %cst = arith.constant dense<0xFF800000> : vector<8x512xf32>
    %14 = vector.multi_reduction <maximumf>, %13, %cst [0] : vector<5x8x512xf32> to vector<8x512xf32>
    %15 = vector.shape_cast %14 : vector<8x512xf32> to vector<1x8x512xf32>
    %16 = vector.broadcast %15 : vector<1x8x512xf32> to vector<5x8x512xf32>
    %17 = arith.subf %13, %16 : vector<5x8x512xf32>
    %18 = math.exp %17 : vector<5x8x512xf32>
    %cst_8 = arith.constant dense<0.000000e+00> : vector<8x512xf32>
    %19 = vector.multi_reduction <add>, %18, %cst_8 [0] : vector<5x8x512xf32> to vector<8x512xf32>
    %20 = arith.mulf %18, %2 : vector<5x8x512xf32>
    %cst_9 = arith.constant dense<0.000000e+00> : vector<8x512xf32>
    %21 = vector.multi_reduction <add>, %20, %cst_9 [0] : vector<5x8x512xf32> to vector<8x512xf32>
    %22 = arith.divf %21, %19 : vector<8x512xf32>
    %c0_10 = arith.constant 0 : index
    %c0_11 = arith.constant 0 : index
    %23 = vector.load %arg7[%c0_10, %c0_11] : memref<8x2560xf32, #tpu.memory_space<vmem>>, vector<8x512xf32>
    tpu.vector_store %arg7[%c0_10, %c0_11], %22 {strides = array<i32>} : memref<8x2560xf32, #tpu.memory_space<vmem>>, vector<8x512xf32>,
    %c0_12 = arith.constant 0 : index
    %c5 = arith.constant 5 : index
    %c0_13 = arith.constant 0 : index
    %c0_14 = arith.constant 0 : index
    %24 = vector.load %arg2[%c0_12, %c5, %c0_13, %c0_14] : memref<1x25x8x512xbf16, #tpu.memory_space<vmem>>, vector<1x5x8x512xbf16>
    %25 = vector.shape_cast %24 : vector<1x5x8x512xbf16> to vector<5x8x512xbf16>
    %26 = arith.extf %25 : vector<5x8x512xbf16> to vector<5x8x512xf32>
    %27 = vector.extract_strided_slice %2 {offsets = [1, 0, 0], sizes = [1, 8, 512], strides = [1, 1, 1]} : vector<5x8x512xf32> to vector<1x8x512xf32>
    %28 = vector.shape_cast %27 : vector<1x8x512xf32> to vector<8x512xf32>
    %29 = vector.broadcast %0 : f32 to vector<8x512xf32>
    %30 = arith.mulf %29, %28 : vector<8x512xf32>
    %31 = vector.shape_cast %30 : vector<8x512xf32> to vector<1x8x512xf32>
    %32 = vector.broadcast %31 : vector<1x8x512xf32> to vector<5x8x512xf32>
    %33 = arith.mulf %32, %2 : vector<5x8x512xf32>
    %34 = arith.addf %33, %26 : vector<5x8x512xf32>
    %cst_15 = arith.constant dense<0xFF800000> : vector<8x512xf32>
    %35 = vector.multi_reduction <maximumf>, %34, %cst_15 [0] : vector<5x8x512xf32> to vector<8x512xf32>
    %36 = vector.shape_cast %35 : vector<8x512xf32> to vector<1x8x512xf32>
    %37 = vector.broadcast %36 : vector<1x8x512xf32> to vector<5x8x512xf32>
    %38 = arith.subf %34, %37 : vector<5x8x512xf32>
    %39 = math.exp %38 : vector<5x8x512xf32>
    %cst_16 = arith.constant dense<0.000000e+00> : vector<8x512xf32>
    %40 = vector.multi_reduction <add>, %39, %cst_16 [0] : vector<5x8x512xf32> to vector<8x512xf32>
    %41 = arith.mulf %39, %2 : vector<5x8x512xf32>
    %cst_17 = arith.constant dense<0.000000e+00> : vector<8x512xf32>
    %42 = vector.multi_reduction <add>, %41, %cst_17 [0] : vector<5x8x512xf32> to vector<8x512xf32>
    %43 = arith.divf %42, %40 : vector<8x512xf32>
    %c0_18 = arith.constant 0 : index
    %c512 = arith.constant 512 : index
    %44 = vector.load %arg7[%c0_18, %c512] : memref<8x2560xf32, #tpu.memory_space<vmem>>, vector<8x512xf32>
    tpu.vector_store %arg7[%c0_18, %c512], %43 {strides = array<i32>} : memref<8x2560xf32, #tpu.memory_space<vmem>>, vector<8x512xf32>,
    %c0_19 = arith.constant 0 : index
    %c10 = arith.constant 10 : index
    %c0_20 = arith.constant 0 : index
    %c0_21 = arith.constant 0 : index
    %45 = vector.load %arg2[%c0_19, %c10, %c0_20, %c0_21] : memref<1x25x8x512xbf16, #tpu.memory_space<vmem>>, vector<1x5x8x512xbf16>
    %46 = vector.shape_cast %45 : vector<1x5x8x512xbf16> to vector<5x8x512xbf16>
    %47 = arith.extf %46 : vector<5x8x512xbf16> to vector<5x8x512xf32>
    %48 = vector.extract_strided_slice %2 {offsets = [2, 0, 0], sizes = [1, 8, 512], strides = [1, 1, 1]} : vector<5x8x512xf32> to vector<1x8x512xf32>
    %49 = vector.shape_cast %48 : vector<1x8x512xf32> to vector<8x512xf32>
    %50 = vector.broadcast %0 : f32 to vector<8x512xf32>
    %51 = arith.mulf %50, %49 : vector<8x512xf32>
    %52 = vector.shape_cast %51 : vector<8x512xf32> to vector<1x8x512xf32>
    %53 = vector.broadcast %52 : vector<1x8x512xf32> to vector<5x8x512xf32>
    %54 = arith.mulf %53, %2 : vector<5x8x512xf32>
    %55 = arith.addf %54, %47 : vector<5x8x512xf32>
    %cst_22 = arith.constant dense<0xFF800000> : vector<8x512xf32>
    %56 = vector.multi_reduction <maximumf>, %55, %cst_22 [0] : vector<5x8x512xf32> to vector<8x512xf32>
    %57 = vector.shape_cast %56 : vector<8x512xf32> to vector<1x8x512xf32>
    %58 = vector.broadcast %57 : vector<1x8x512xf32> to vector<5x8x512xf32>
    %59 = arith.subf %55, %58 : vector<5x8x512xf32>
    %60 = math.exp %59 : vector<5x8x512xf32>
    %cst_23 = arith.constant dense<0.000000e+00> : vector<8x512xf32>
    %61 = vector.multi_reduction <add>, %60, %cst_23 [0] : vector<5x8x512xf32> to vector<8x512xf32>
    %62 = arith.mulf %60, %2 : vector<5x8x512xf32>
    %cst_24 = arith.constant dense<0.000000e+00> : vector<8x512xf32>
    %63 = vector.multi_reduction <add>, %62, %cst_24 [0] : vector<5x8x512xf32> to vector<8x512xf32>
    %64 = arith.divf %63, %61 : vector<8x512xf32>
    %c0_25 = arith.constant 0 : index
    %c1024 = arith.constant 1024 : index
    %65 = vector.load %arg7[%c0_25, %c1024] : memref<8x2560xf32, #tpu.memory_space<vmem>>, vector<8x512xf32>
    tpu.vector_store %arg7[%c0_25, %c1024], %64 {strides = array<i32>} : memref<8x2560xf32, #tpu.memory_space<vmem>>, vector<8x512xf32>,
    %c0_26 = arith.constant 0 : index
    %c15 = arith.constant 15 : index
    %c0_27 = arith.constant 0 : index
    %c0_28 = arith.constant 0 : index
    %66 = vector.load %arg2[%c0_26, %c15, %c0_27, %c0_28] : memref<1x25x8x512xbf16, #tpu.memory_space<vmem>>, vector<1x5x8x512xbf16>
    %67 = vector.shape_cast %66 : vector<1x5x8x512xbf16> to vector<5x8x512xbf16>
    %68 = arith.extf %67 : vector<5x8x512xbf16> to vector<5x8x512xf32>
    %69 = vector.extract_strided_slice %2 {offsets = [3, 0, 0], sizes = [1, 8, 512], strides = [1, 1, 1]} : vector<5x8x512xf32> to vector<1x8x512xf32>
    %70 = vector.shape_cast %69 : vector<1x8x512xf32> to vector<8x512xf32>
    %71 = vector.broadcast %0 : f32 to vector<8x512xf32>
    %72 = arith.mulf %71, %70 : vector<8x512xf32>
    %73 = vector.shape_cast %72 : vector<8x512xf32> to vector<1x8x512xf32>
    %74 = vector.broadcast %73 : vector<1x8x512xf32> to vector<5x8x512xf32>
    %75 = arith.mulf %74, %2 : vector<5x8x512xf32>
    %76 = arith.addf %75, %68 : vector<5x8x512xf32>
    %cst_29 = arith.constant dense<0xFF800000> : vector<8x512xf32>
    %77 = vector.multi_reduction <maximumf>, %76, %cst_29 [0] : vector<5x8x512xf32> to vector<8x512xf32>
    %78 = vector.shape_cast %77 : vector<8x512xf32> to vector<1x8x512xf32>
    %79 = vector.broadcast %78 : vector<1x8x512xf32> to vector<5x8x512xf32>
    %80 = arith.subf %76, %79 : vector<5x8x512xf32>
    %81 = math.exp %80 : vector<5x8x512xf32>
    %cst_30 = arith.constant dense<0.000000e+00> : vector<8x512xf32>
    %82 = vector.multi_reduction <add>, %81, %cst_30 [0] : vector<5x8x512xf32> to vector<8x512xf32>
    %83 = arith.mulf %81, %2 : vector<5x8x512xf32>
    %cst_31 = arith.constant dense<0.000000e+00> : vector<8x512xf32>
    %84 = vector.multi_reduction <add>, %83, %cst_31 [0] : vector<5x8x512xf32> to vector<8x512xf32>
    %85 = arith.divf %84, %82 : vector<8x512xf32>
    %c0_32 = arith.constant 0 : index
    %c1536 = arith.constant 1536 : index
    %86 = vector.load %arg7[%c0_32, %c1536] : memref<8x2560xf32, #tpu.memory_space<vmem>>, vector<8x512xf32>
    tpu.vector_store %arg7[%c0_32, %c1536], %85 {strides = array<i32>} : memref<8x2560xf32, #tpu.memory_space<vmem>>, vector<8x512xf32>,
    %c0_33 = arith.constant 0 : index
    %c20 = arith.constant 20 : index
    %c0_34 = arith.constant 0 : index
    %c0_35 = arith.constant 0 : index
    %87 = vector.load %arg2[%c0_33, %c20, %c0_34, %c0_35] : memref<1x25x8x512xbf16, #tpu.memory_space<vmem>>, vector<1x5x8x512xbf16>
    %88 = vector.shape_cast %87 : vector<1x5x8x512xbf16> to vector<5x8x512xbf16>
    %89 = arith.extf %88 : vector<5x8x512xbf16> to vector<5x8x512xf32>
    %90 = vector.extract_strided_slice %2 {offsets = [4, 0, 0], sizes = [1, 8, 512], strides = [1, 1, 1]} : vector<5x8x512xf32> to vector<1x8x512xf32>
    %91 = vector.shape_cast %90 : vector<1x8x512xf32> to vector<8x512xf32>
    %92 = vector.broadcast %0 : f32 to vector<8x512xf32>
    %93 = arith.mulf %92, %91 : vector<8x512xf32>
    %94 = vector.shape_cast %93 : vector<8x512xf32> to vector<1x8x512xf32>
    %95 = vector.broadcast %94 : vector<1x8x512xf32> to vector<5x8x512xf32>
    %96 = arith.mulf %95, %2 : vector<5x8x512xf32>
    %97 = arith.addf %96, %89 : vector<5x8x512xf32>
    %cst_36 = arith.constant dense<0xFF800000> : vector<8x512xf32>
    %98 = vector.multi_reduction <maximumf>, %97, %cst_36 [0] : vector<5x8x512xf32> to vector<8x512xf32>
    %99 = vector.shape_cast %98 : vector<8x512xf32> to vector<1x8x512xf32>
    %100 = vector.broadcast %99 : vector<1x8x512xf32> to vector<5x8x512xf32>
    %101 = arith.subf %97, %100 : vector<5x8x512xf32>
    %102 = math.exp %101 : vector<5x8x512xf32>
    %cst_37 = arith.constant dense<0.000000e+00> : vector<8x512xf32>
    %103 = vector.multi_reduction <add>, %102, %cst_37 [0] : vector<5x8x512xf32> to vector<8x512xf32>
    %104 = arith.mulf %102, %2 : vector<5x8x512xf32>
    %cst_38 = arith.constant dense<0.000000e+00> : vector<8x512xf32>
    %105 = vector.multi_reduction <add>, %104, %cst_38 [0] : vector<5x8x512xf32> to vector<8x512xf32>
    %106 = arith.divf %105, %103 : vector<8x512xf32>
    %c0_39 = arith.constant 0 : index
    %c2048 = arith.constant 2048 : index
    %107 = vector.load %arg7[%c0_39, %c2048] : memref<8x2560xf32, #tpu.memory_space<vmem>>, vector<8x512xf32>
    tpu.vector_store %arg7[%c0_39, %c2048], %106 {strides = array<i32>} : memref<8x2560xf32, #tpu.memory_space<vmem>>, vector<8x512xf32>,
    %c0_40 = arith.constant 0 : index
    %c0_41 = arith.constant 0 : index
    %108 = vector.load %arg4[%c0_40, %c0_41] : memref<8x8xf32, #tpu.memory_space<vmem>>, vector<8x8xf32>
    %c0_42 = arith.constant 0 : index
    %c0_43 = arith.constant 0 : index
    %109 = vector.load %arg7[%c0_42, %c0_43] : memref<8x2560xf32, #tpu.memory_space<vmem>>, vector<8x2560xf32>
    %cst_44 = arith.constant dense<0.000000e+00> : vector<8x2560xf32>
    %110 = tpu.matmul %108, %109, %cst_44 {dimension_numbers = #tpu.dot_dimension_numbers<[1], [0], [0], [1], [0, 0, 1, 1], [], []>} : vector<8x8xf32>, vector<8x2560xf32>, vector<8x2560xf32> -> vector<8x2560xf32>
    %111 = vector.extract_strided_slice %110 {offsets = [0, 0], sizes = [8, 512], strides = [1, 1]} : vector<8x2560xf32> to vector<8x512xf32>
    %112 = vector.extract_strided_slice %110 {offsets = [0, 512], sizes = [8, 512], strides = [1, 1]} : vector<8x2560xf32> to vector<8x512xf32>
    %113 = arith.maximumf %111, %112 : vector<8x512xf32>
    %114 = vector.extract_strided_slice %110 {offsets = [0, 1024], sizes = [8, 512], strides = [1, 1]} : vector<8x2560xf32> to vector<8x512xf32>
    %115 = arith.maximumf %113, %114 : vector<8x512xf32>
    %116 = vector.extract_strided_slice %110 {offsets = [0, 1536], sizes = [8, 512], strides = [1, 1]} : vector<8x2560xf32> to vector<8x512xf32>
    %117 = arith.maximumf %115, %116 : vector<8x512xf32>
    %118 = vector.extract_strided_slice %110 {offsets = [0, 2048], sizes = [8, 512], strides = [1, 1]} : vector<8x2560xf32> to vector<8x512xf32>
    %119 = arith.maximumf %117, %118 : vector<8x512xf32>
    %c0_45 = arith.constant 0 : index
    %c0_46 = arith.constant 0 : index
    %120 = vector.load %arg5[%c0_45, %c0_46] : memref<8x1xf32, #tpu.memory_space<vmem>>, vector<8x1xf32>
    %121 = vector.broadcast %120 : vector<8x1xf32> to vector<8x512xf32>
    %122 = arith.addf %119, %121 : vector<8x512xf32>
    %c0_47 = arith.constant 0 : index
    %c0_48 = arith.constant 0 : index
    %c0_49 = arith.constant 0 : index
    %123 = vector.load %arg6[%c0_47, %c0_48, %c0_49] : memref<1x8x512xf32, #tpu.memory_space<vmem>>, vector<1x8x512xf32>
    %124 = vector.shape_cast %123 : vector<1x8x512xf32> to vector<8x512xf32>
    %125 = vector.shape_cast %122 : vector<8x512xf32> to vector<1x8x512xf32>
    tpu.vector_store %arg6[%c0_47, %c0_48, %c0_49], %125 {strides = array<i32>} : memref<1x8x512xf32, #tpu.memory_space<vmem>>, vector<1x8x512xf32>,
    return
  }
  func.func @transform_0(%arg0: i32) -> i32 {
    %c0_i32 = arith.constant 0 : i32
    %c0_i32_0 = arith.constant 0 : i32
    return %c0_i32 : i32
  }
  func.func @transform_1(%arg0: i32) -> (i32, i32, i32, i32) {
    %c0_i32 = arith.constant 0 : i32
    %c0_i32_0 = arith.constant 0 : i32
    %c0_i32_1 = arith.constant 0 : i32
    %c0_i32_2 = arith.constant 0 : i32
    return %arg0, %c0_i32, %c0_i32_0, %c0_i32_1 : i32, i32, i32, i32
  }
  func.func @transform_2(%arg0: i32) -> (i32, i32, i32, i32) {
    %c0_i32 = arith.constant 0 : i32
    %c0_i32_0 = arith.constant 0 : i32
    %c0_i32_1 = arith.constant 0 : i32
    %c0_i32_2 = arith.constant 0 : i32
    return %arg0, %c0_i32, %c0_i32_0, %c0_i32_1 : i32, i32, i32, i32
  }
  func.func @transform_3(%arg0: i32) -> (i32, i32) {
    %c0_i32 = arith.constant 0 : i32
    %c0_i32_0 = arith.constant 0 : i32
    %c0_i32_1 = arith.constant 0 : i32
    return %c0_i32, %c0_i32_0 : i32, i32
  }
  func.func @transform_4(%arg0: i32) -> (i32, i32) {
    %c0_i32 = arith.constant 0 : i32
    %c0_i32_0 = arith.constant 0 : i32
    %c0_i32_1 = arith.constant 0 : i32
    return %c0_i32, %c0_i32_0 : i32, i32
  }
  func.func @transform_5(%arg0: i32) -> (i32, i32, i32) {
    %c0_i32 = arith.constant 0 : i32
    %c0_i32_0 = arith.constant 0 : i32
    %c0_i32_1 = arith.constant 0 : i32
    return %arg0, %c0_i32, %c0_i32_0 : i32, i32, i32
  }
}

</mosaic_0001>

<llo_original>
// kernel: tpu_custom_call.1
$region0: #{tpu_custom_call.1}
  #allocation0 [shape = 'u32[]', space=smem, size = 0x4, offset = 0x4, fixed_abs, tag = 'smem constant byte address 0x4 - core index']
  #allocation1 [shape = 'u32[72,128]{1,0:T(1,128)}', space=vmem, size = 0x9000, scoped, tag = 'internal scratch']
  #allocation2 [shape = 'f32[8,2560]{1,0:T(8,128)}', space=vmem, size = 0x14000, scoped, tag = 'scratch operand']
  #allocation3 [shape = 'f32[1]{0:T(128)S(6)}', space=smem, size = 0x200, scoped, tag = 'scoped memory for tpu_custom_call.1']
  %s0 = inlined_call_operand.<no memory space> [shape: f32[1], index: 0, kind: input, shape index: {}]
  %s1 = inlined_call_operand.hbm [shape: bf16[2,25,8,512], index: 1, kind: input, shape index: {}]
  %s2 = inlined_call_operand.hbm [shape: f32[2,5,8,512], index: 2, kind: input, shape index: {}]
  %s3 = inlined_call_operand.vmem [shape: f32[8,8], index: 3, kind: input, shape index: {}]
  %s4 = inlined_call_operand.vmem [shape: f32[8,1], index: 4, kind: input, shape index: {}]
  %s5 = inlined_call_operand.hbm [shape: f32[2,8,512], index: 5, kind: output, shape index: {}]
  %s6 = sld [smem:[#allocation0]]
  $region61: #{tpu_custom_call.1} parent=0
    _
  %s8 = ssub.s32 1, %s6
  %s9 = scalar_select 0, %s8, %s6
  %10 = sst [smem:[#allocation3]] %s0
  $region1: #{tpu_custom_call.1} parent=0
    #allocation4 [shape = 'u8[409600]{0}', space=vmem, size = 0x64000, scoped, tag = 'input window, operand 1']
    #allocation5 [shape = 's32[2]{0}', space=sflag, size = 0x8, scoped, tag = 'scoped memory for tpu_custom_call.1']
    #allocation6 [shape = 's32[2]{0}', space=sflag, size = 0x8, scoped, tag = 'scoped memory for tpu_custom_call.1']
    #allocation7 [shape = 'u8[163840]{0}', space=vmem, size = 0x28000, scoped, tag = 'input window, operand 2']
    #allocation8 [shape = 's32[2]{0}', space=sflag, size = 0x8, scoped, tag = 'scoped memory for tpu_custom_call.1']
    #allocation9 [shape = 'u8[32768]{0}', space=vmem, size = 0x8000, scoped, tag = 'output window, operand 0']
    %11 = vsyncpa [#allocation5], 0
    %s12 = scalar_lea.sflag [#allocation5], 1
    %13 = vsyncpa %s12, 0
    %14 = vsyncpa [#allocation8], 0
    %s15 = scalar_lea.sflag [#allocation8], 1
    %16 = vsyncpa %s15, 0
    %17 = vsyncpa [#allocation6], 0
    %s18 = scalar_lea.sflag [#allocation6], 1
    %19 = vsyncpa %s18, 0
    loop: start=0, step=1, limit=4
    $region2: #{tpu_custom_call.1} parent=1 // loop_pre_header
      _
    $region3: #{tpu_custom_call.1} parent=1 // loop_header
      %s21 = sphi 0, %s25
      %p22 = scmp.ge.s32.totalorder %s21, 4
      %s29 = sphi 0, %s29
      %s31 = sphi 0, %s29
      %s32 = sphi 0, %s31
      %s46 = sphi 0, %s32
      %s52 = sphi 0, %s54
      %s55 = sphi 0, %s52
      %s56 = sphi 0, %s55
      %s72 = sphi 0, %s56
      %s78 = sphi 0, %s80
      %s81 = sphi 0, %s78
      %s82 = sphi 0, %s81
      %s98 = sphi 0, %s82
      %s102 = sphi 0, %s102
      %s104 = sphi 0, %s102
      %s105 = sphi 0, %s104
      %s119 = sphi 0, %s105
      %s123 = sphi 0, %s123
      %s125 = sphi 0, %s123
      %s126 = sphi 0, %s125
      %s140 = sphi 0, %s126
      %s146 = sphi 0, %s148
      %s149 = sphi 0, %s146
      %s150 = sphi 0, %s149
      %s166 = sphi 0, %s150
    $region4: #{tpu_custom_call.1} parent=1 // loop_header_branch
      %24 = sbr.rel (%p22) target = $region8
    $region5: #{tpu_custom_call.1} parent=1 // loop_body
      %s26 = ssub.s32 %s21, 1
      %s27 = ssub.s32 %s21, 2
      %s28 = sadd.s32 %s21, 1
      %s30 = sadd.s32 %s29, 1
      %p33 = scmp.eq.s32.totalorder %s21, 1
      %p34 = scmp.ne.s32.totalorder %s29, %s31
      %p35 = scmp.eq.s32.totalorder %s21, 0
      %p36 = por %p34, %p35
      %p37 = scmp.ne.s32.totalorder %s29, %s31
      %p38 = scmp.eq.s32.totalorder %s26, 1
      %p39 = por %p37, %p38
      %p40 = scmp.ne.s32.totalorder %s31, %s32
      %p41 = scmp.eq.s32.totalorder %s26, 0
      %p42 = por %p40, %p41
      %p43 = scmp.ne.s32.totalorder %s31, %s32
      %p44 = scmp.eq.s32.totalorder %s27, 1
      %p45 = por %p43, %p44
      %p47 = scmp.ne.s32.totalorder %s32, %s46
      %p48 = scmp.eq.s32.totalorder %s27, 0
      %p49 = por %p47, %p48
      %s50 = ssub.s32 %s21, %s28
      %p51 = scmp.eq.s32.totalorder %s50, 0
      %s53 = sadd.s32 %s52, 1
      %s54 = scalar_select %p51, %s52, %s53
      %p57 = pneg %p51
      %p58 = scmp.eq.s32.totalorder %s21, 1
      %p59 = por %p57, %p58
      %p60 = scmp.ne.s32.totalorder %s52, %s55
      %p61 = scmp.eq.s32.totalorder %s21, 0
      %p62 = por %p60, %p61
      %p63 = scmp.ne.s32.totalorder %s52, %s55
      %p64 = scmp.eq.s32.totalorder %s26, 1
      %p65 = por %p63, %p64
      %p66 = scmp.ne.s32.totalorder %s55, %s56
      %p67 = scmp.eq.s32.totalorder %s26, 0
      %p68 = por %p66, %p67
      %p69 = scmp.ne.s32.totalorder %s55, %s56
      %p70 = scmp.eq.s32.totalorder %s27, 1
      %p71 = por %p69, %p70
      %p73 = scmp.ne.s32.totalorder %s56, %s72
      %p74 = scmp.eq.s32.totalorder %s27, 0
      %p75 = por %p73, %p74
      %s76 = ssub.s32 %s21, %s28
      %p77 = scmp.eq.s32.totalorder %s76, 0
      %s79 = sadd.s32 %s78, 1
      %s80 = scalar_select %p77, %s78, %s79
      %p83 = pneg %p77
      %p84 = scmp.eq.s32.totalorder %s21, 1
      %p85 = por %p83, %p84
      %p86 = scmp.ne.s32.totalorder %s78, %s81
      %p87 = scmp.eq.s32.totalorder %s21, 0
      %p88 = por %p86, %p87
      %p89 = scmp.ne.s32.totalorder %s78, %s81
      %p90 = scmp.eq.s32.totalorder %s26, 1
      %p91 = por %p89, %p90
      %p92 = scmp.ne.s32.totalorder %s81, %s82
      %p93 = scmp.eq.s32.totalorder %s26, 0
      %p94 = por %p92, %p93
      %p95 = scmp.ne.s32.totalorder %s81, %s82
      %p96 = scmp.eq.s32.totalorder %s27, 1
      %p97 = por %p95, %p96
      %p99 = scmp.ne.s32.totalorder %s82, %s98
      %p100 = scmp.eq.s32.totalorder %s27, 0
      %p101 = por %p99, %p100
      %s103 = sadd.s32 %s102, 1
      %p106 = scmp.eq.s32.totalorder %s21, 1
      %p107 = scmp.ne.s32.totalorder %s102, %s104
      %p108 = scmp.eq.s32.totalorder %s21, 0
      %p109 = por %p107, %p108
      %p110 = scmp.ne.s32.totalorder %s102, %s104
      %p111 = scmp.eq.s32.totalorder %s26, 1
      %p112 = por %p110, %p111
      %p113 = scmp.ne.s32.totalorder %s104, %s105
      %p114 = scmp.eq.s32.totalorder %s26, 0
      %p115 = por %p113, %p114
      %p116 = scmp.ne.s32.totalorder %s104, %s105
      %p117 = scmp.eq.s32.totalorder %s27, 1
      %p118 = por %p116, %p117
      %p120 = scmp.ne.s32.totalorder %s105, %s119
      %p121 = scmp.eq.s32.totalorder %s27, 0
      %p122 = por %p120, %p121
      %s124 = sadd.s32 %s123, 1
      %p127 = scmp.eq.s32.totalorder %s21, 1
      %p128 = scmp.ne.s32.totalorder %s123, %s125
      %p129 = scmp.eq.s32.totalorder %s21, 0
      %p130 = por %p128, %p129
      %p131 = scmp.ne.s32.totalorder %s123, %s125
      %p132 = scmp.eq.s32.totalorder %s26, 1
      %p133 = por %p131, %p132
      %p134 = scmp.ne.s32.totalorder %s125, %s126
      %p135 = scmp.eq.s32.totalorder %s26, 0
      %p136 = por %p134, %p135
      %p137 = scmp.ne.s32.totalorder %s125, %s126
      %p138 = scmp.eq.s32.totalorder %s27, 1
      %p139 = por %p137, %p138
      %p141 = scmp.ne.s32.totalorder %s126, %s140
      %p142 = scmp.eq.s32.totalorder %s27, 0
      %p143 = por %p141, %p142
      %s144 = ssub.s32 %s21, %s28
      %p145 = scmp.eq.s32.totalorder %s144, 0
      %s147 = sadd.s32 %s146, 1
      %s148 = scalar_select %p145, %s146, %s147
      %p151 = pneg %p145
      %p152 = scmp.eq.s32.totalorder %s21, 1
      %p153 = por %p151, %p152
      %p154 = scmp.ne.s32.totalorder %s146, %s149
      %p155 = scmp.eq.s32.totalorder %s21, 0
      %p156 = por %p154, %p155
      %p157 = scmp.ne.s32.totalorder %s146, %s149
      %p158 = scmp.eq.s32.totalorder %s26, 1
      %p159 = por %p157, %p158
      %p160 = scmp.ne.s32.totalorder %s149, %s150
      %p161 = scmp.eq.s32.totalorder %s26, 0
      %p162 = por %p160, %p161
      %p163 = scmp.ne.s32.totalorder %s149, %s150
      %p164 = scmp.eq.s32.totalorder %s27, 1
      %p165 = por %p163, %p164
      %p167 = scmp.ne.s32.totalorder %s150, %s166
      %p168 = scmp.eq.s32.totalorder %s27, 0
      %p169 = por %p167, %p168
      %p170 = scmp.le.s32.totalorder 1, %s21
      %p171 = scmp.lt.s32.totalorder %s21, 3
      %p172 = pnand %p170, %p171
      %p173 = pneg %p172
      // Predicated region
      $region9: #{tpu_custom_call.1} parent=5 // pred_check
        _
      $region10: #{tpu_custom_call.1} parent=5 // pred_check_branch
        %175 = sbr.rel (%p172) target = $region12
      $region11: #{tpu_custom_call.1} parent=5 // pred_region
        %s176 = ssub.s32 %s21, 1
        // Predicated region
        $region13: #{tpu_custom_call.1} parent=11 // pred_check
          %p177 = pneg %p42
        $region14: #{tpu_custom_call.1} parent=11 // pred_check_branch
          %179 = sbr.rel (%p177) target = $region16
        $region15: #{tpu_custom_call.1} parent=11 // pred_region
          _
        $region16: #{tpu_custom_call.1} parent=11 // pred_fallthru
          _
        // Predicated region
        $region17: #{tpu_custom_call.1} parent=11 // pred_check
          %p180 = pneg %p115
        $region18: #{tpu_custom_call.1} parent=11 // pred_check_branch
          %182 = sbr.rel (%p180) target = $region20
        $region19: #{tpu_custom_call.1} parent=11 // pred_region
          _
        $region20: #{tpu_custom_call.1} parent=11 // pred_fallthru
          _
        // Predicated region
        $region21: #{tpu_custom_call.1} parent=11 // pred_check
          %p183 = pneg %p136
        $region22: #{tpu_custom_call.1} parent=11 // pred_check_branch
          %185 = sbr.rel (%p183) target = $region24
        $region23: #{tpu_custom_call.1} parent=11 // pred_region
          _
        $region24: #{tpu_custom_call.1} parent=11 // pred_fallthru
          _
      $region12: #{tpu_custom_call.1} parent=5 // pred_fallthru
        _
      %p186 = scmp.lt.s32.totalorder %s21, 2
      // Predicated region
      $region25: #{tpu_custom_call.1} parent=5 // pred_check
        %p187 = pneg %p186
      $region26: #{tpu_custom_call.1} parent=5 // pred_check_branch
        %189 = sbr.rel (%p187) target = $region28
      $region27: #{tpu_custom_call.1} parent=5 // pred_region
        // Predicated region
        $region29: #{tpu_custom_call.1} parent=27 // pred_check
          %p190 = pneg %p62
        $region30: #{tpu_custom_call.1} parent=27 // pred_check_branch
          %192 = sbr.rel (%p190) target = $region32
        $region31: #{tpu_custom_call.1} parent=27 // pred_region
          %s193 = sand.u32 %s52, 1
          %s194 = scalar_lea.sflag [#allocation5], %s193
          %s195 = sand.u32 %s52, 1
          %s196 = smul.addr %s195, 400
          %s197 = scalar_lea.vmem [#allocation4], %s196
          %199 = vsyncadd %s194, 0
          %s200 = smul.addr %s21, 100
          %s201 = smul.addr %s200, 4
          %s202 = scalar_lea.hbm %s1, %s201
          %s203 = sshll.u32 %s202, 4
          %s204 = int_to_ptr.hbm [resolvable:$true] %s203
          %s205 = sshll.u32 %s197, 4
          %s206 = int_to_ptr.vmem [resolvable:$true] %s205
          %211 = dma.hbm_to_vmem [thread:$0]  %s204, 6400, %s206, %s194, 256, 256, 16
        $region32: #{tpu_custom_call.1} parent=27 // pred_fallthru
          _
        // Predicated region
        $region33: #{tpu_custom_call.1} parent=27 // pred_check
          %p212 = pneg %p88
        $region34: #{tpu_custom_call.1} parent=27 // pred_check_branch
          %214 = sbr.rel (%p212) target = $region36
        $region35: #{tpu_custom_call.1} parent=27 // pred_region
          %s215 = sand.u32 %s78, 1
          %s216 = scalar_lea.sflag [#allocation8], %s215
          %s217 = sand.u32 %s78, 1
          %s218 = smul.addr %s217, 160
          %s219 = scalar_lea.vmem [#allocation7], %s218
          %221 = vsyncadd %s216, 0
          %s222 = smul.addr %s21, 20
          %s223 = smul.addr %s222, 8
          %s224 = scalar_lea.hbm %s2, %s223
          %s225 = sshll.u32 %s224, 4
          %s226 = int_to_ptr.hbm [resolvable:$true] %s225
          %s227 = sshll.u32 %s219, 4
          %s228 = int_to_ptr.vmem [resolvable:$true] %s227
          %233 = dma.hbm_to_vmem [thread:$0]  %s226, 2560, %s228, %s216, 512, 512, 32
        $region36: #{tpu_custom_call.1} parent=27 // pred_fallthru
          _
      $region28: #{tpu_custom_call.1} parent=5 // pred_fallthru
        _
      %p234 = scmp.le.s32.totalorder 1, %s21
      %p235 = scmp.lt.s32.totalorder %s21, 3
      %p236 = pnand %p234, %p235
      %p237 = pneg %p236
      // Predicated region
      $region37: #{tpu_custom_call.1} parent=5 // pred_check
        _
      $region38: #{tpu_custom_call.1} parent=5 // pred_check_branch
        %239 = sbr.rel (%p236) target = $region40
      $region39: #{tpu_custom_call.1} parent=5 // pred_region
        %s240 = ssub.s32 %s21, 1
        %s241 = sand.u32 %s55, 1
        %s242 = scalar_lea.sflag [#allocation5], %s241
        %s243 = sand.u32 %s55, 1
        %s244 = smul.addr %s243, 400
        %s245 = scalar_lea.vmem [#allocation4], %s244
        // Predicated region
        $region41: #{tpu_custom_call.1} parent=39 // pred_check
          %p246 = pneg %p68
        $region42: #{tpu_custom_call.1} parent=39 // pred_check_branch
          %248 = sbr.rel (%p246) target = $region44
        $region43: #{tpu_custom_call.1} parent=39 // pred_region
          %250 = dma.done %s242, 6400
        $region44: #{tpu_custom_call.1} parent=39 // pred_fallthru
          _
        %s251 = sand.u32 %s81, 1
        %s252 = scalar_lea.sflag [#allocation8], %s251
        %s253 = sand.u32 %s81, 1
        %s254 = smul.addr %s253, 160
        %s255 = scalar_lea.vmem [#allocation7], %s254
        // Predicated region
        $region45: #{tpu_custom_call.1} parent=39 // pred_check
          %p256 = pneg %p94
        $region46: #{tpu_custom_call.1} parent=39 // pred_check_branch
          %258 = sbr.rel (%p256) target = $region48
        $region47: #{tpu_custom_call.1} parent=39 // pred_region
          %260 = dma.done %s252, 2560
        $region48: #{tpu_custom_call.1} parent=39 // pred_fallthru
          _
        %p261 = pneg %p42
        %p262 = pneg %p39
        %s263 = sand.u32 %s55, 1
        %s264 = scalar_lea.sflag [#allocation5], %s263
        %s265 = sand.u32 %s55, 1
        %s266 = smul.addr %s265, 400
        %s267 = scalar_lea.vmem [#allocation4], %s266
        %p268 = pneg %p68
        %p269 = pneg %p65
        %s270 = sand.u32 %s81, 1
        %s271 = scalar_lea.sflag [#allocation8], %s270
        %s272 = sand.u32 %s81, 1
        %s273 = smul.addr %s272, 160
        %s274 = scalar_lea.vmem [#allocation7], %s273
        %p275 = pneg %p94
        %p276 = pneg %p91
        %p277 = pneg %p115
        %p278 = pneg %p112
        %p279 = pneg %p136
        %p280 = pneg %p133
        %p281 = pneg %p162
        %p282 = pneg %p159
        %s283 = sand.u32 %s149, 1
        %s284 = scalar_lea.sflag [#allocation6], %s283
        %s285 = sand.u32 %s149, 1
        %s286 = smul.addr %s285, 32
        %s287 = scalar_lea.vmem [#allocation9], %s286
        %s288 = sld [smem:[#allocation3]]
        %v289 = vld [vmem:[%s255] sm:$0xff]
        %v290 = vld [vmem:[%s255 + $0x8] sm:$0xff]
        %v291 = vld [vmem:[%s255 + $0x10] sm:$0xff]
        %v292 = vld [vmem:[%s255 + $0x18] sm:$0xff]
        %v293 = vld [vmem:[%s255 + $0x20] sm:$0xff]
        %v294 = vld [vmem:[%s255 + $0x28] sm:$0xff]
        %v295 = vld [vmem:[%s255 + $0x30] sm:$0xff]
        %v296 = vld [vmem:[%s255 + $0x38] sm:$0xff]
        %v297 = vld [vmem:[%s255 + $0x40] sm:$0xff]
        %v298 = vld [vmem:[%s255 + $0x48] sm:$0xff]
        %v299 = vld [vmem:[%s255 + $0x50] sm:$0xff]
        %v300 = vld [vmem:[%s255 + $0x58] sm:$0xff]
        %v301 = vld [vmem:[%s255 + $0x60] sm:$0xff]
        %v302 = vld [vmem:[%s255 + $0x68] sm:$0xff]
        %v303 = vld [vmem:[%s255 + $0x70] sm:$0xff]
        %v304 = vld [vmem:[%s255 + $0x78] sm:$0xff]
        %v305 = vld [vmem:[%s255 + $0x80] sm:$0xff]
        %v306 = vld [vmem:[%s255 + $0x88] sm:$0xff]
        %v307 = vld [vmem:[%s255 + $0x90] sm:$0xff]
        %v308 = vld [vmem:[%s255 + $0x98] sm:$0xff]
        %v309 = vld [vmem:[%s245] sm:$0xff]
        %v310 = vld [vmem:[%s245 + $0x8] sm:$0xff]
        %v311 = vld [vmem:[%s245 + $0x10] sm:$0xff]
        %v312 = vld [vmem:[%s245 + $0x18] sm:$0xff]
        %v313 = vld [vmem:[%s245 + $0x20] sm:$0xff]
        %v314 = vld [vmem:[%s245 + $0x28] sm:$0xff]
        %v315 = vld [vmem:[%s245 + $0x30] sm:$0xff]
        %v316 = vld [vmem:[%s245 + $0x38] sm:$0xff]
        %v317 = vld [vmem:[%s245 + $0x40] sm:$0xff]
        %v318 = vld [vmem:[%s245 + $0x48] sm:$0xff]
        %v319 = vunpack.c.l.bf16 %v309
        %v320 = vunpack.c.h.bf16 %v309
        %v321 = vunpack.c.l.bf16 %v310
        %v322 = vunpack.c.h.bf16 %v310
        %v323 = vunpack.c.l.bf16 %v311
        %v324 = vunpack.c.h.bf16 %v311
        %v325 = vunpack.c.l.bf16 %v312
        %v326 = vunpack.c.h.bf16 %v312
        %v327 = vunpack.c.l.bf16 %v313
        %v328 = vunpack.c.h.bf16 %v313
        %v329 = vunpack.c.l.bf16 %v314
        %v330 = vunpack.c.h.bf16 %v314
        %v331 = vunpack.c.l.bf16 %v315
        %v332 = vunpack.c.h.bf16 %v315
        %v333 = vunpack.c.l.bf16 %v316
        %v334 = vunpack.c.h.bf16 %v316
        %v335 = vunpack.c.l.bf16 %v317
        %v336 = vunpack.c.h.bf16 %v317
        %v337 = vunpack.c.l.bf16 %v318
        %v338 = vunpack.c.h.bf16 %v318
        %v339 = vstv %s288
        %v340 = vmul.f32 %v339, %v289
        %v341 = vmul.f32 %v339, %v290
        %v342 = vmul.f32 %v339, %v291
        %v343 = vmul.f32 %v339, %v292
        %v344 = vmul.f32 %v340, %v289
        %v345 = vmul.f32 %v341, %v290
        %v346 = vmul.f32 %v342, %v291
        %v347 = vmul.f32 %v343, %v292
        %v348 = vmul.f32 %v340, %v293
        %v349 = vmul.f32 %v341, %v294
        %v350 = vmul.f32 %v342, %v295
        %v351 = vmul.f32 %v343, %v296
        %v352 = vmul.f32 %v340, %v297
        %v353 = vmul.f32 %v341, %v298
        %v354 = vmul.f32 %v342, %v299
        %v355 = vmul.f32 %v343, %v300
        %v356 = vmul.f32 %v340, %v301
        %v357 = vmul.f32 %v341, %v302
        %v358 = vmul.f32 %v342, %v303
        %v359 = vmul.f32 %v343, %v304
        %v360 = vmul.f32 %v340, %v305
        %v361 = vmul.f32 %v341, %v306
        %v362 = vmul.f32 %v342, %v307
        %v363 = vmul.f32 %v343, %v308
        %v364 = vadd.f32 %v344, %v319
        %v365 = vadd.f32 %v345, %v320
        %v366 = vadd.f32 %v346, %v321
        %v367 = vadd.f32 %v347, %v322
        %v368 = vadd.f32 %v348, %v323
        %v369 = vadd.f32 %v349, %v324
        %v370 = vadd.f32 %v350, %v325
        %v371 = vadd.f32 %v351, %v326
        %v372 = vadd.f32 %v352, %v327
        %v373 = vadd.f32 %v353, %v328
        %v374 = vadd.f32 %v354, %v329
        %v375 = vadd.f32 %v355, %v330
        %v376 = vadd.f32 %v356, %v331
        %v377 = vadd.f32 %v357, %v332
        %v378 = vadd.f32 %v358, %v333
        %v379 = vadd.f32 %v359, %v334
        %v380 = vadd.f32 %v360, %v335
        %v381 = vadd.f32 %v361, %v336
        %v382 = vadd.f32 %v362, %v337
        %v383 = vadd.f32 %v363, %v338
        %v384 = vmax.f32 %v364, %v368
        %v385 = vmax.f32 %v384, %v372
        %v386 = vmax.f32 %v385, %v376
        %v387 = vmax.f32 %v386, %v380
        %v388 = vmax.f32 %v365, %v369
        %v389 = vmax.f32 %v388, %v373
        %v390 = vmax.f32 %v389, %v377
        %v391 = vmax.f32 %v390, %v381
        %v392 = vmax.f32 %v366, %v370
        %v393 = vmax.f32 %v392, %v374
        %v394 = vmax.f32 %v393, %v378
        %v395 = vmax.f32 %v394, %v382
        %v396 = vmax.f32 %v367, %v371
        %v397 = vmax.f32 %v396, %v375
        %v398 = vmax.f32 %v397, %v379
        %v399 = vmax.f32 %v398, %v383
        %v400 = vsub.f32 %v364, %v387
        %v401 = vsub.f32 %v365, %v391
        %v402 = vsub.f32 %v366, %v395
        %v403 = vsub.f32 %v367, %v399
        %v404 = vsub.f32 %v368, %v387
        %v405 = vsub.f32 %v369, %v391
        %v406 = vsub.f32 %v370, %v395
        %v407 = vsub.f32 %v371, %v399
        %v408 = vsub.f32 %v372, %v387
        %v409 = vsub.f32 %v373, %v391
        %v410 = vsub.f32 %v374, %v395
        %v411 = vsub.f32 %v375, %v399
        %v412 = vsub.f32 %v376, %v387
        %v413 = vsub.f32 %v377, %v391
        %v414 = vsub.f32 %v378, %v395
        %v415 = vsub.f32 %v379, %v399
        %v416 = vsub.f32 %v380, %v387
        %v417 = vsub.f32 %v381, %v391
        %v418 = vsub.f32 %v382, %v395
        %v419 = vsub.f32 %v383, %v399
        %v420 = vmul.f32 %v400, 1.442695
        %v421 = vpow.pop %v420
        %v422 = vmul.f32 %v401, 1.442695
        %v423 = vpow.pop %v422
        %v424 = vmul.f32 %v402, 1.442695
        %v425 = vpow.pop %v424
        %v426 = vmul.f32 %v403, 1.442695
        %v427 = vpow.pop %v426
        %v428 = vmul.f32 %v404, 1.442695
        %v429 = vpow.pop %v428
        %v430 = vmul.f32 %v405, 1.442695
        %v431 = vpow.pop %v430
        %v432 = vmul.f32 %v406, 1.442695
        %v433 = vpow.pop %v432
        %v434 = vmul.f32 %v407, 1.442695
        %v435 = vpow.pop %v434
        %v436 = vmul.f32 %v408, 1.442695
        %v437 = vpow.pop %v436
        %v438 = vmul.f32 %v409, 1.442695
        %v439 = vpow.pop %v438
        %v440 = vmul.f32 %v410, 1.442695
        %v441 = vpow.pop %v440
        %v442 = vmul.f32 %v411, 1.442695
        %v443 = vpow.pop %v442
        %v444 = vmul.f32 %v412, 1.442695
        %v445 = vpow.pop %v444
        %v446 = vmul.f32 %v413, 1.442695
        %v447 = vpow.pop %v446
        %v448 = vmul.f32 %v414, 1.442695
        %v449 = vpow.pop %v448
        %v450 = vmul.f32 %v415, 1.442695
        %v451 = vpow.pop %v450
        %v452 = vmul.f32 %v416, 1.442695
        %v453 = vpow.pop %v452
        %v454 = vmul.f32 %v417, 1.442695
        %v455 = vpow.pop %v454
        %v456 = vmul.f32 %v418, 1.442695
        %v457 = vpow.pop %v456
        %v458 = vmul.f32 %v419, 1.442695
        %v459 = vpow.pop %v458
        %v460 = vadd.f32 %v421, %v429
        %v461 = vadd.f32 %v460, %v437
        %v462 = vadd.f32 %v461, %v445
        %v463 = vadd.f32 %v462, %v453
        %v464 = vadd.f32 %v423, %v431
        %v465 = vadd.f32 %v464, %v439
        %v466 = vadd.f32 %v465, %v447
        %v467 = vadd.f32 %v466, %v455
        %v468 = vadd.f32 %v425, %v433
        %v469 = vadd.f32 %v468, %v441
        %v470 = vadd.f32 %v469, %v449
        %v471 = vadd.f32 %v470, %v457
        %v472 = vadd.f32 %v427, %v435
        %v473 = vadd.f32 %v472, %v443
        %v474 = vadd.f32 %v473, %v451
        %v475 = vadd.f32 %v474, %v459
        %v476 = vmul.f32 %v421, %v289
        %v477 = vmul.f32 %v423, %v290
        %v478 = vmul.f32 %v425, %v291
        %v479 = vmul.f32 %v427, %v292
        %v480 = vmul.f32 %v429, %v293
        %v481 = vmul.f32 %v431, %v294
        %v482 = vmul.f32 %v433, %v295
        %v483 = vmul.f32 %v435, %v296
        %v484 = vmul.f32 %v437, %v297
        %v485 = vmul.f32 %v439, %v298
        %v486 = vmul.f32 %v441, %v299
        %v487 = vmul.f32 %v443, %v300
        %v488 = vmul.f32 %v445, %v301
        %v489 = vmul.f32 %v447, %v302
        %v490 = vmul.f32 %v449, %v303
        %v491 = vmul.f32 %v451, %v304
        %v492 = vmul.f32 %v453, %v305
        %v493 = vmul.f32 %v455, %v306
        %v494 = vmul.f32 %v457, %v307
        %v495 = vmul.f32 %v459, %v308
        %v496 = vadd.f32 %v476, %v480
        %v497 = vadd.f32 %v496, %v484
        %v498 = vadd.f32 %v497, %v488
        %v499 = vadd.f32 %v498, %v492
        %v500 = vadd.f32 %v477, %v481
        %v501 = vadd.f32 %v500, %v485
        %v502 = vadd.f32 %v501, %v489
        %v503 = vadd.f32 %v502, %v493
        %v504 = vadd.f32 %v478, %v482
        %v505 = vadd.f32 %v504, %v486
        %v506 = vadd.f32 %v505, %v490
        %v507 = vadd.f32 %v506, %v494
        %v508 = vadd.f32 %v479, %v483
        %v509 = vadd.f32 %v508, %v487
        %v510 = vadd.f32 %v509, %v491
        %v511 = vadd.f32 %v510, %v495
        %v512 = vrcp.pop %v463
        %v513 = vmul.f32 %v463, %v512
        %v514 = vsub.f32 1.0, %v513
        %v515 = vmul.f32 %v512, %v514
        %v516 = vadd.f32 %v512, %v515
        %vm517 = vweird.f32 %v463
        %vm518 = vweird.f32 %v512
        %vm519 = vmor %vm517, %vm518
        %v520 = vsel %vm519, %v512, %v516
        %v521 = vand.u32 2147483647, %v463
        %vm522 = vcmp.eq.f32.partialorder %v521, 8.507059e+37
        %v523 = vand.u32 %v463, 2147483648
        %v524 = vor.u32 1.1754944e-38, %v523
        %v525 = vsel %vm522, %v524, %v520
        %v526 = vmul.f32 %v499, %v525
        %v527 = vrcp.pop %v467
        %v528 = vmul.f32 %v467, %v527
        %v529 = vsub.f32 1.0, %v528
        %v530 = vmul.f32 %v527, %v529
        %v531 = vadd.f32 %v527, %v530
        %vm532 = vweird.f32 %v467
        %vm533 = vweird.f32 %v527
        %vm534 = vmor %vm532, %vm533
        %v535 = vsel %vm534, %v527, %v531
        %v536 = vand.u32 2147483647, %v467
        %vm537 = vcmp.eq.f32.partialorder %v536, 8.507059e+37
        %v538 = vand.u32 %v467, 2147483648
        %v539 = vor.u32 1.1754944e-38, %v538
        %v540 = vsel %vm537, %v539, %v535
        %v541 = vmul.f32 %v503, %v540
        %v542 = vrcp.pop %v471
        %v543 = vmul.f32 %v471, %v542
        %v544 = vsub.f32 1.0, %v543
        %v545 = vmul.f32 %v542, %v544
        %v546 = vadd.f32 %v542, %v545
        %vm547 = vweird.f32 %v471
        %vm548 = vweird.f32 %v542
        %vm549 = vmor %vm547, %vm548
        %v550 = vsel %vm549, %v542, %v546
        %v551 = vand.u32 2147483647, %v471
        %vm552 = vcmp.eq.f32.partialorder %v551, 8.507059e+37
        %v553 = vand.u32 %v471, 2147483648
        %v554 = vor.u32 1.1754944e-38, %v553
        %v555 = vsel %vm552, %v554, %v550
        %v556 = vmul.f32 %v507, %v555
        %v557 = vrcp.pop %v475
        %v558 = vmul.f32 %v475, %v557
        %v559 = vsub.f32 1.0, %v558
        %v560 = vmul.f32 %v557, %v559
        %v561 = vadd.f32 %v557, %v560
        %vm562 = vweird.f32 %v475
        %vm563 = vweird.f32 %v557
        %vm564 = vmor %vm562, %vm563
        %v565 = vsel %vm564, %v557, %v561
        %v566 = vand.u32 2147483647, %v475
        %vm567 = vcmp.eq.f32.partialorder %v566, 8.507059e+37
        %v568 = vand.u32 %v475, 2147483648
        %v569 = vor.u32 1.1754944e-38, %v568
        %v570 = vsel %vm567, %v569, %v565
        %v571 = vmul.f32 %v511, %v570
        %572 = vst [vmem:[#allocation2] sm:$0xff] %v526
        %573 = vst [vmem:[#allocation2 + $0x8] sm:$0xff] %v541
        %574 = vst [vmem:[#allocation2 + $0x10] sm:$0xff] %v556
        %575 = vst [vmem:[#allocation2 + $0x18] sm:$0xff] %v571
        %s576 = scalar_lea.vmem %s245, 80 [#allocation4]
        %v577 = vld [vmem:[%s576] sm:$0xff]
        %v578 = vld [vmem:[%s576 + $0x8] sm:$0xff]
        %v579 = vld [vmem:[%s576 + $0x10] sm:$0xff]
        %v580 = vld [vmem:[%s576 + $0x18] sm:$0xff]
        %v581 = vld [vmem:[%s576 + $0x20] sm:$0xff]
        %v582 = vld [vmem:[%s576 + $0x28] sm:$0xff]
        %v583 = vld [vmem:[%s576 + $0x30] sm:$0xff]
        %v584 = vld [vmem:[%s576 + $0x38] sm:$0xff]
        %v585 = vld [vmem:[%s576 + $0x40] sm:$0xff]
        %v586 = vld [vmem:[%s576 + $0x48] sm:$0xff]
        %v587 = vunpack.c.l.bf16 %v577
        %v588 = vunpack.c.h.bf16 %v577
        %v589 = vunpack.c.l.bf16 %v578
        %v590 = vunpack.c.h.bf16 %v578
        %v591 = vunpack.c.l.bf16 %v579
        %v592 = vunpack.c.h.bf16 %v579
        %v593 = vunpack.c.l.bf16 %v580
        %v594 = vunpack.c.h.bf16 %v580
        %v595 = vunpack.c.l.bf16 %v581
        %v596 = vunpack.c.h.bf16 %v581
        %v597 = vunpack.c.l.bf16 %v582
        %v598 = vunpack.c.h.bf16 %v582
        %v599 = vunpack.c.l.bf16 %v583
        %v600 = vunpack.c.h.bf16 %v583
        %v601 = vunpack.c.l.bf16 %v584
        %v602 = vunpack.c.h.bf16 %v584
        %v603 = vunpack.c.l.bf16 %v585
        %v604 = vunpack.c.h.bf16 %v585
        %v605 = vunpack.c.l.bf16 %v586
        %v606 = vunpack.c.h.bf16 %v586
        %v607 = vmul.f32 %v339, %v293
        %v608 = vmul.f32 %v339, %v294
        %v609 = vmul.f32 %v339, %v295
        %v610 = vmul.f32 %v339, %v296
        %v611 = vmul.f32 %v607, %v289
        %v612 = vmul.f32 %v608, %v290
        %v613 = vmul.f32 %v609, %v291
        %v614 = vmul.f32 %v610, %v292
        %v615 = vmul.f32 %v607, %v293
        %v616 = vmul.f32 %v608, %v294
        %v617 = vmul.f32 %v609, %v295
        %v618 = vmul.f32 %v610, %v296
        %v619 = vmul.f32 %v607, %v297
        %v620 = vmul.f32 %v608, %v298
        %v621 = vmul.f32 %v609, %v299
        %v622 = vmul.f32 %v610, %v300
        %v623 = vmul.f32 %v607, %v301
        %v624 = vmul.f32 %v608, %v302
        %v625 = vmul.f32 %v609, %v303
        %v626 = vmul.f32 %v610, %v304
        %v627 = vmul.f32 %v607, %v305
        %v628 = vmul.f32 %v608, %v306
        %v629 = vmul.f32 %v609, %v307
        %v630 = vmul.f32 %v610, %v308
        %v631 = vadd.f32 %v611, %v587
        %v632 = vadd.f32 %v612, %v588
        %v633 = vadd.f32 %v613, %v589
        %v634 = vadd.f32 %v614, %v590
        %v635 = vadd.f32 %v615, %v591
        %v636 = vadd.f32 %v616, %v592
        %v637 = vadd.f32 %v617, %v593
        %v638 = vadd.f32 %v618, %v594
        %v639 = vadd.f32 %v619, %v595
        %v640 = vadd.f32 %v620, %v596
        %v641 = vadd.f32 %v621, %v597
        %v642 = vadd.f32 %v622, %v598
        %v643 = vadd.f32 %v623, %v599
        %v644 = vadd.f32 %v624, %v600
        %v645 = vadd.f32 %v625, %v601
        %v646 = vadd.f32 %v626, %v602
        %v647 = vadd.f32 %v627, %v603
        %v648 = vadd.f32 %v628, %v604
        %v649 = vadd.f32 %v629, %v605
        %v650 = vadd.f32 %v630, %v606
        %v651 = vmax.f32 %v631, %v635
        %v652 = vmax.f32 %v651, %v639
        %v653 = vmax.f32 %v652, %v643
        %v654 = vmax.f32 %v653, %v647
        %v655 = vmax.f32 %v632, %v636
        %v656 = vmax.f32 %v655, %v640
        %v657 = vmax.f32 %v656, %v644
        %v658 = vmax.f32 %v657, %v648
        %v659 = vmax.f32 %v633, %v637
        %v660 = vmax.f32 %v659, %v641
        %v661 = vmax.f32 %v660, %v645
        %v662 = vmax.f32 %v661, %v649
        %v663 = vmax.f32 %v634, %v638
        %v664 = vmax.f32 %v663, %v642
        %v665 = vmax.f32 %v664, %v646
        %v666 = vmax.f32 %v665, %v650
        %v667 = vsub.f32 %v631, %v654
        %v668 = vsub.f32 %v632, %v658
        %v669 = vsub.f32 %v633, %v662
        %v670 = vsub.f32 %v634, %v666
        %v671 = vsub.f32 %v635, %v654
        %v672 = vsub.f32 %v636, %v658
        %v673 = vsub.f32 %v637, %v662
        %v674 = vsub.f32 %v638, %v666
        %v675 = vsub.f32 %v639, %v654
        %v676 = vsub.f32 %v640, %v658
        %v677 = vsub.f32 %v641, %v662
        %v678 = vsub.f32 %v642, %v666
        %v679 = vsub.f32 %v643, %v654
        %v680 = vsub.f32 %v644, %v658
        %v681 = vsub.f32 %v645, %v662
        %v682 = vsub.f32 %v646, %v666
        %v683 = vsub.f32 %v647, %v654
        %v684 = vsub.f32 %v648, %v658
        %v685 = vsub.f32 %v649, %v662
        %v686 = vsub.f32 %v650, %v666
        %v687 = vmul.f32 %v667, 1.442695
        %v688 = vpow.pop %v687
        %v689 = vmul.f32 %v668, 1.442695
        %v690 = vpow.pop %v689
        %v691 = vmul.f32 %v669, 1.442695
        %v692 = vpow.pop %v691
        %v693 = vmul.f32 %v670, 1.442695
        %v694 = vpow.pop %v693
        %v695 = vmul.f32 %v671, 1.442695
        %v696 = vpow.pop %v695
        %v697 = vmul.f32 %v672, 1.442695
        %v698 = vpow.pop %v697
        %v699 = vmul.f32 %v673, 1.442695
        %v700 = vpow.pop %v699
        %v701 = vmul.f32 %v674, 1.442695
        %v702 = vpow.pop %v701
        %v703 = vmul.f32 %v675, 1.442695
        %v704 = vpow.pop %v703
        %v705 = vmul.f32 %v676, 1.442695
        %v706 = vpow.pop %v705
        %v707 = vmul.f32 %v677, 1.442695
        %v708 = vpow.pop %v707
        %v709 = vmul.f32 %v678, 1.442695
        %v710 = vpow.pop %v709
        %v711 = vmul.f32 %v679, 1.442695
        %v712 = vpow.pop %v711
        %v713 = vmul.f32 %v680, 1.442695
        %v714 = vpow.pop %v713
        %v715 = vmul.f32 %v681, 1.442695
        %v716 = vpow.pop %v715
        %v717 = vmul.f32 %v682, 1.442695
        %v718 = vpow.pop %v717
        %v719 = vmul.f32 %v683, 1.442695
        %v720 = vpow.pop %v719
        %v721 = vmul.f32 %v684, 1.442695
        %v722 = vpow.pop %v721
        %v723 = vmul.f32 %v685, 1.442695
        %v724 = vpow.pop %v723
        %v725 = vmul.f32 %v686, 1.442695
        %v726 = vpow.pop %v725
        %v727 = vadd.f32 %v688, %v696
        %v728 = vadd.f32 %v727, %v704
        %v729 = vadd.f32 %v728, %v712
        %v730 = vadd.f32 %v729, %v720
        %v731 = vadd.f32 %v690, %v698
        %v732 = vadd.f32 %v731, %v706
        %v733 = vadd.f32 %v732, %v714
        %v734 = vadd.f32 %v733, %v722
        %v735 = vadd.f32 %v692, %v700
        %v736 = vadd.f32 %v735, %v708
        %v737 = vadd.f32 %v736, %v716
        %v738 = vadd.f32 %v737, %v724
        %v739 = vadd.f32 %v694, %v702
        %v740 = vadd.f32 %v739, %v710
        %v741 = vadd.f32 %v740, %v718
        %v742 = vadd.f32 %v741, %v726
        %v743 = vmul.f32 %v688, %v289
        %v744 = vmul.f32 %v690, %v290
        %v745 = vmul.f32 %v692, %v291
        %v746 = vmul.f32 %v694, %v292
        %v747 = vmul.f32 %v696, %v293
        %v748 = vmul.f32 %v698, %v294
        %v749 = vmul.f32 %v700, %v295
        %v750 = vmul.f32 %v702, %v296
        %v751 = vmul.f32 %v704, %v297
        %v752 = vmul.f32 %v706, %v298
        %v753 = vmul.f32 %v708, %v299
        %v754 = vmul.f32 %v710, %v300
        %v755 = vmul.f32 %v712, %v301
        %v756 = vmul.f32 %v714, %v302
        %v757 = vmul.f32 %v716, %v303
        %v758 = vmul.f32 %v718, %v304
        %v759 = vmul.f32 %v720, %v305
        %v760 = vmul.f32 %v722, %v306
        %v761 = vmul.f32 %v724, %v307
        %v762 = vmul.f32 %v726, %v308
        %v763 = vadd.f32 %v743, %v747
        %v764 = vadd.f32 %v763, %v751
        %v765 = vadd.f32 %v764, %v755
        %v766 = vadd.f32 %v765, %v759
        %v767 = vadd.f32 %v744, %v748
        %v768 = vadd.f32 %v767, %v752
        %v769 = vadd.f32 %v768, %v756
        %v770 = vadd.f32 %v769, %v760
        %v771 = vadd.f32 %v745, %v749
        %v772 = vadd.f32 %v771, %v753
        %v773 = vadd.f32 %v772, %v757
        %v774 = vadd.f32 %v773, %v761
        %v775 = vadd.f32 %v746, %v750
        %v776 = vadd.f32 %v775, %v754
        %v777 = vadd.f32 %v776, %v758
        %v778 = vadd.f32 %v777, %v762
        %v779 = vrcp.pop %v730
        %v780 = vmul.f32 %v730, %v779
        %v781 = vsub.f32 1.0, %v780
        %v782 = vmul.f32 %v779, %v781
        %v783 = vadd.f32 %v779, %v782
        %vm784 = vweird.f32 %v730
        %vm785 = vweird.f32 %v779
        %vm786 = vmor %vm784, %vm785
        %v787 = vsel %vm786, %v779, %v783
        %v788 = vand.u32 2147483647, %v730
        %vm789 = vcmp.eq.f32.partialorder %v788, 8.507059e+37
        %v790 = vand.u32 %v730, 2147483648
        %v791 = vor.u32 1.1754944e-38, %v790
        %v792 = vsel %vm789, %v791, %v787
        %v793 = vmul.f32 %v766, %v792
        %v794 = vrcp.pop %v734
        %v795 = vmul.f32 %v734, %v794
        %v796 = vsub.f32 1.0, %v795
        %v797 = vmul.f32 %v794, %v796
        %v798 = vadd.f32 %v794, %v797
        %vm799 = vweird.f32 %v734
        %vm800 = vweird.f32 %v794
        %vm801 = vmor %vm799, %vm800
        %v802 = vsel %vm801, %v794, %v798
        %v803 = vand.u32 2147483647, %v734
        %vm804 = vcmp.eq.f32.partialorder %v803, 8.507059e+37
        %v805 = vand.u32 %v734, 2147483648
        %v806 = vor.u32 1.1754944e-38, %v805
        %v807 = vsel %vm804, %v806, %v802
        %v808 = vmul.f32 %v770, %v807
        %v809 = vrcp.pop %v738
        %v810 = vmul.f32 %v738, %v809
        %v811 = vsub.f32 1.0, %v810
        %v812 = vmul.f32 %v809, %v811
        %v813 = vadd.f32 %v809, %v812
        %vm814 = vweird.f32 %v738
        %vm815 = vweird.f32 %v809
        %vm816 = vmor %vm814, %vm815
        %v817 = vsel %vm816, %v809, %v813
        %v818 = vand.u32 2147483647, %v738
        %vm819 = vcmp.eq.f32.partialorder %v818, 8.507059e+37
        %v820 = vand.u32 %v738, 2147483648
        %v821 = vor.u32 1.1754944e-38, %v820
        %v822 = vsel %vm819, %v821, %v817
        %v823 = vmul.f32 %v774, %v822
        %v824 = vrcp.pop %v742
        %v825 = vmul.f32 %v742, %v824
        %v826 = vsub.f32 1.0, %v825
        %v827 = vmul.f32 %v824, %v826
        %v828 = vadd.f32 %v824, %v827
        %vm829 = vweird.f32 %v742
        %vm830 = vweird.f32 %v824
        %vm831 = vmor %vm829, %vm830
        %v832 = vsel %vm831, %v824, %v828
        %v833 = vand.u32 2147483647, %v742
        %vm834 = vcmp.eq.f32.partialorder %v833, 8.507059e+37
        %v835 = vand.u32 %v742, 2147483648
        %v836 = vor.u32 1.1754944e-38, %v835
        %v837 = vsel %vm834, %v836, %v832
        %v838 = vmul.f32 %v778, %v837
        %839 = vst [vmem:[#allocation2 + $0x20] sm:$0xff] %v793
        %840 = vst [vmem:[#allocation2 + $0x28] sm:$0xff] %v808
        %841 = vst [vmem:[#allocation2 + $0x30] sm:$0xff] %v823
        %842 = vst [vmem:[#allocation2 + $0x38] sm:$0xff] %v838
        %s843 = scalar_lea.vmem %s245, 160 [#allocation4]
        %v844 = vld [vmem:[%s843] sm:$0xff]
        %v845 = vld [vmem:[%s843 + $0x8] sm:$0xff]
        %v846 = vld [vmem:[%s843 + $0x10] sm:$0xff]
        %v847 = vld [vmem:[%s843 + $0x18] sm:$0xff]
        %v848 = vld [vmem:[%s843 + $0x20] sm:$0xff]
        %v849 = vld [vmem:[%s843 + $0x28] sm:$0xff]
        %v850 = vld [vmem:[%s843 + $0x30] sm:$0xff]
        %v851 = vld [vmem:[%s843 + $0x38] sm:$0xff]
        %v852 = vld [vmem:[%s843 + $0x40] sm:$0xff]
        %v853 = vld [vmem:[%s843 + $0x48] sm:$0xff]
        %v854 = vunpack.c.l.bf16 %v844
        %v855 = vunpack.c.h.bf16 %v844
        %v856 = vunpack.c.l.bf16 %v845
        %v857 = vunpack.c.h.bf16 %v845
        %v858 = vunpack.c.l.bf16 %v846
        %v859 = vunpack.c.h.bf16 %v846
        %v860 = vunpack.c.l.bf16 %v847
        %v861 = vunpack.c.h.bf16 %v847
        %v862 = vunpack.c.l.bf16 %v848
        %v863 = vunpack.c.h.bf16 %v848
        %v864 = vunpack.c.l.bf16 %v849
        %v865 = vunpack.c.h.bf16 %v849
        %v866 = vunpack.c.l.bf16 %v850
        %v867 = vunpack.c.h.bf16 %v850
        %v868 = vunpack.c.l.bf16 %v851
        %v869 = vunpack.c.h.bf16 %v851
        %v870 = vunpack.c.l.bf16 %v852
        %v871 = vunpack.c.h.bf16 %v852
        %v872 = vunpack.c.l.bf16 %v853
        %v873 = vunpack.c.h.bf16 %v853
        %v874 = vmul.f32 %v339, %v297
        %v875 = vmul.f32 %v339, %v298
        %v876 = vmul.f32 %v339, %v299
        %v877 = vmul.f32 %v339, %v300
        %v878 = vmul.f32 %v874, %v289
        %v879 = vmul.f32 %v875, %v290
        %v880 = vmul.f32 %v876, %v291
        %v881 = vmul.f32 %v877, %v292
        %v882 = vmul.f32 %v874, %v293
        %v883 = vmul.f32 %v875, %v294
        %v884 = vmul.f32 %v876, %v295
        %v885 = vmul.f32 %v877, %v296
        %v886 = vmul.f32 %v874, %v297
        %v887 = vmul.f32 %v875, %v298
        %v888 = vmul.f32 %v876, %v299
        %v889 = vmul.f32 %v877, %v300
        %v890 = vmul.f32 %v874, %v301
        %v891 = vmul.f32 %v875, %v302
        %v892 = vmul.f32 %v876, %v303
        %v893 = vmul.f32 %v877, %v304
        %v894 = vmul.f32 %v874, %v305
        %v895 = vmul.f32 %v875, %v306
        %v896 = vmul.f32 %v876, %v307
        %v897 = vmul.f32 %v877, %v308
        %v898 = vadd.f32 %v878, %v854
        %v899 = vadd.f32 %v879, %v855
        %v900 = vadd.f32 %v880, %v856
        %v901 = vadd.f32 %v881, %v857
        %v902 = vadd.f32 %v882, %v858
        %v903 = vadd.f32 %v883, %v859
        %v904 = vadd.f32 %v884, %v860
        %v905 = vadd.f32 %v885, %v861
        %v906 = vadd.f32 %v886, %v862
        %v907 = vadd.f32 %v887, %v863
        %v908 = vadd.f32 %v888, %v864
        %v909 = vadd.f32 %v889, %v865
        %v910 = vadd.f32 %v890, %v866
        %v911 = vadd.f32 %v891, %v867
        %v912 = vadd.f32 %v892, %v868
        %v913 = vadd.f32 %v893, %v869
        %v914 = vadd.f32 %v894, %v870
        %v915 = vadd.f32 %v895, %v871
        %v916 = vadd.f32 %v896, %v872
        %v917 = vadd.f32 %v897, %v873
        %v918 = vmax.f32 %v898, %v902
        %v919 = vmax.f32 %v918, %v906
        %v920 = vmax.f32 %v919, %v910
        %v921 = vmax.f32 %v920, %v914
        %v922 = vmax.f32 %v899, %v903
        %v923 = vmax.f32 %v922, %v907
        %v924 = vmax.f32 %v923, %v911
        %v925 = vmax.f32 %v924, %v915
        %v926 = vmax.f32 %v900, %v904
        %v927 = vmax.f32 %v926, %v908
        %v928 = vmax.f32 %v927, %v912
        %v929 = vmax.f32 %v928, %v916
        %v930 = vmax.f32 %v901, %v905
        %v931 = vmax.f32 %v930, %v909
        %v932 = vmax.f32 %v931, %v913
        %v933 = vmax.f32 %v932, %v917
        %v934 = vsub.f32 %v898, %v921
        %v935 = vsub.f32 %v899, %v925
        %v936 = vsub.f32 %v900, %v929
        %v937 = vsub.f32 %v901, %v933
        %v938 = vsub.f32 %v902, %v921
        %v939 = vsub.f32 %v903, %v925
        %v940 = vsub.f32 %v904, %v929
        %v941 = vsub.f32 %v905, %v933
        %v942 = vsub.f32 %v906, %v921
        %v943 = vsub.f32 %v907, %v925
        %v944 = vsub.f32 %v908, %v929
        %v945 = vsub.f32 %v909, %v933
        %v946 = vsub.f32 %v910, %v921
        %v947 = vsub.f32 %v911, %v925
        %v948 = vsub.f32 %v912, %v929
        %v949 = vsub.f32 %v913, %v933
        %v950 = vsub.f32 %v914, %v921
        %v951 = vsub.f32 %v915, %v925
        %v952 = vsub.f32 %v916, %v929
        %v953 = vsub.f32 %v917, %v933
        %v954 = vmul.f32 %v934, 1.442695
        %v955 = vpow.pop %v954
        %v956 = vmul.f32 %v935, 1.442695
        %v957 = vpow.pop %v956
        %v958 = vmul.f32 %v936, 1.442695
        %v959 = vpow.pop %v958
        %v960 = vmul.f32 %v937, 1.442695
        %v961 = vpow.pop %v960
        %v962 = vmul.f32 %v938, 1.442695
        %v963 = vpow.pop %v962
        %v964 = vmul.f32 %v939, 1.442695
        %v965 = vpow.pop %v964
        %v966 = vmul.f32 %v940, 1.442695
        %v967 = vpow.pop %v966
        %v968 = vmul.f32 %v941, 1.442695
        %v969 = vpow.pop %v968
        %v970 = vmul.f32 %v942, 1.442695
        %v971 = vpow.pop %v970
        %v972 = vmul.f32 %v943, 1.442695
        %v973 = vpow.pop %v972
        %v974 = vmul.f32 %v944, 1.442695
        %v975 = vpow.pop %v974
        %v976 = vmul.f32 %v945, 1.442695
        %v977 = vpow.pop %v976
        %v978 = vmul.f32 %v946, 1.442695
        %v979 = vpow.pop %v978
        %v980 = vmul.f32 %v947, 1.442695
        %v981 = vpow.pop %v980
        %v982 = vmul.f32 %v948, 1.442695
        %v983 = vpow.pop %v982
        %v984 = vmul.f32 %v949, 1.442695
        %v985 = vpow.pop %v984
        %v986 = vmul.f32 %v950, 1.442695
        %v987 = vpow.pop %v986
        %v988 = vmul.f32 %v951, 1.442695
        %v989 = vpow.pop %v988
        %v990 = vmul.f32 %v952, 1.442695
        %v991 = vpow.pop %v990
        %v992 = vmul.f32 %v953, 1.442695
        %v993 = vpow.pop %v992
        %v994 = vadd.f32 %v955, %v963
        %v995 = vadd.f32 %v994, %v971
        %v996 = vadd.f32 %v995, %v979
        %v997 = vadd.f32 %v996, %v987
        %v998 = vadd.f32 %v957, %v965
        %v999 = vadd.f32 %v998, %v973
        %v1000 = vadd.f32 %v999, %v981
        %v1001 = vadd.f32 %v1000, %v989
        %v1002 = vadd.f32 %v959, %v967
        %v1003 = vadd.f32 %v1002, %v975
        %v1004 = vadd.f32 %v1003, %v983
        %v1005 = vadd.f32 %v1004, %v991
        %v1006 = vadd.f32 %v961, %v969
        %v1007 = vadd.f32 %v1006, %v977
        %v1008 = vadd.f32 %v1007, %v985
        %v1009 = vadd.f32 %v1008, %v993
        %v1010 = vmul.f32 %v955, %v289
        %v1011 = vmul.f32 %v957, %v290
        %v1012 = vmul.f32 %v959, %v291
        %v1013 = vmul.f32 %v961, %v292
        %v1014 = vmul.f32 %v963, %v293
        %v1015 = vmul.f32 %v965, %v294
        %v1016 = vmul.f32 %v967, %v295
        %v1017 = vmul.f32 %v969, %v296
        %v1018 = vmul.f32 %v971, %v297
        %v1019 = vmul.f32 %v973, %v298
        %v1020 = vmul.f32 %v975, %v299
        %v1021 = vmul.f32 %v977, %v300
        %v1022 = vmul.f32 %v979, %v301
        %v1023 = vmul.f32 %v981, %v302
        %v1024 = vmul.f32 %v983, %v303
        %v1025 = vmul.f32 %v985, %v304
        %v1026 = vmul.f32 %v987, %v305
        %v1027 = vmul.f32 %v989, %v306
        %v1028 = vmul.f32 %v991, %v307
        %v1029 = vmul.f32 %v993, %v308
        %v1030 = vadd.f32 %v1010, %v1014
        %v1031 = vadd.f32 %v1030, %v1018
        %v1032 = vadd.f32 %v1031, %v1022
        %v1033 = vadd.f32 %v1032, %v1026
        %v1034 = vadd.f32 %v1011, %v1015
        %v1035 = vadd.f32 %v1034, %v1019
        %v1036 = vadd.f32 %v1035, %v1023
        %v1037 = vadd.f32 %v1036, %v1027
        %v1038 = vadd.f32 %v1012, %v1016
        %v1039 = vadd.f32 %v1038, %v1020
        %v1040 = vadd.f32 %v1039, %v1024
        %v1041 = vadd.f32 %v1040, %v1028
        %v1042 = vadd.f32 %v1013, %v1017
        %v1043 = vadd.f32 %v1042, %v1021
        %v1044 = vadd.f32 %v1043, %v1025
        %v1045 = vadd.f32 %v1044, %v1029
        %v1046 = vrcp.pop %v997
        %v1047 = vmul.f32 %v997, %v1046
        %v1048 = vsub.f32 1.0, %v1047
        %v1049 = vmul.f32 %v1046, %v1048
        %v1050 = vadd.f32 %v1046, %v1049
        %vm1051 = vweird.f32 %v997
        %vm1052 = vweird.f32 %v1046
        %vm1053 = vmor %vm1051, %vm1052
        %v1054 = vsel %vm1053, %v1046, %v1050
        %v1055 = vand.u32 2147483647, %v997
        %vm1056 = vcmp.eq.f32.partialorder %v1055, 8.507059e+37
        %v1057 = vand.u32 %v997, 2147483648
        %v1058 = vor.u32 1.1754944e-38, %v1057
        %v1059 = vsel %vm1056, %v1058, %v1054
        %v1060 = vmul.f32 %v1033, %v1059
        %v1061 = vrcp.pop %v1001
        %v1062 = vmul.f32 %v1001, %v1061
        %v1063 = vsub.f32 1.0, %v1062
        %v1064 = vmul.f32 %v1061, %v1063
        %v1065 = vadd.f32 %v1061, %v1064
        %vm1066 = vweird.f32 %v1001
        %vm1067 = vweird.f32 %v1061
        %vm1068 = vmor %vm1066, %vm1067
        %v1069 = vsel %vm1068, %v1061, %v1065
        %v1070 = vand.u32 2147483647, %v1001
        %vm1071 = vcmp.eq.f32.partialorder %v1070, 8.507059e+37
        %v1072 = vand.u32 %v1001, 2147483648
        %v1073 = vor.u32 1.1754944e-38, %v1072
        %v1074 = vsel %vm1071, %v1073, %v1069
        %v1075 = vmul.f32 %v1037, %v1074
        %v1076 = vrcp.pop %v1005
        %v1077 = vmul.f32 %v1005, %v1076
        %v1078 = vsub.f32 1.0, %v1077
        %v1079 = vmul.f32 %v1076, %v1078
        %v1080 = vadd.f32 %v1076, %v1079
        %vm1081 = vweird.f32 %v1005
        %vm1082 = vweird.f32 %v1076
        %vm1083 = vmor %vm1081, %vm1082
        %v1084 = vsel %vm1083, %v1076, %v1080
        %v1085 = vand.u32 2147483647, %v1005
        %vm1086 = vcmp.eq.f32.partialorder %v1085, 8.507059e+37
        %v1087 = vand.u32 %v1005, 2147483648
        %v1088 = vor.u32 1.1754944e-38, %v1087
        %v1089 = vsel %vm1086, %v1088, %v1084
        %v1090 = vmul.f32 %v1041, %v1089
        %v1091 = vrcp.pop %v1009
        %v1092 = vmul.f32 %v1009, %v1091
        %v1093 = vsub.f32 1.0, %v1092
        %v1094 = vmul.f32 %v1091, %v1093
        %v1095 = vadd.f32 %v1091, %v1094
        %vm1096 = vweird.f32 %v1009
        %vm1097 = vweird.f32 %v1091
        %vm1098 = vmor %vm1096, %vm1097
        %v1099 = vsel %vm1098, %v1091, %v1095
        %v1100 = vand.u32 2147483647, %v1009
        %vm1101 = vcmp.eq.f32.partialorder %v1100, 8.507059e+37
        %v1102 = vand.u32 %v1009, 2147483648
        %v1103 = vor.u32 1.1754944e-38, %v1102
        %v1104 = vsel %vm1101, %v1103, %v1099
        %v1105 = vmul.f32 %v1045, %v1104
        %1106 = vst [vmem:[#allocation2 + $0x40] sm:$0xff] %v1060
        %1107 = vst [vmem:[#allocation2 + $0x48] sm:$0xff] %v1075
        %1108 = vst [vmem:[#allocation2 + $0x50] sm:$0xff] %v1090
        %1109 = vst [vmem:[#allocation2 + $0x58] sm:$0xff] %v1105
        %s1110 = scalar_lea.vmem %s245, 240 [#allocation4]
        %v1111 = vld [vmem:[%s1110] sm:$0xff]
        %v1112 = vld [vmem:[%s1110 + $0x8] sm:$0xff]
        %v1113 = vld [vmem:[%s1110 + $0x10] sm:$0xff]
        %v1114 = vld [vmem:[%s1110 + $0x18] sm:$0xff]
        %v1115 = vld [vmem:[%s1110 + $0x20] sm:$0xff]
        %v1116 = vld [vmem:[%s1110 + $0x28] sm:$0xff]
        %v1117 = vld [vmem:[%s1110 + $0x30] sm:$0xff]
        %v1118 = vld [vmem:[%s1110 + $0x38] sm:$0xff]
        %v1119 = vld [vmem:[%s1110 + $0x40] sm:$0xff]
        %v1120 = vld [vmem:[%s1110 + $0x48] sm:$0xff]
        %v1121 = vunpack.c.l.bf16 %v1111
        %v1122 = vunpack.c.h.bf16 %v1111
        %v1123 = vunpack.c.l.bf16 %v1112
        %v1124 = vunpack.c.h.bf16 %v1112
        %v1125 = vunpack.c.l.bf16 %v1113
        %v1126 = vunpack.c.h.bf16 %v1113
        %v1127 = vunpack.c.l.bf16 %v1114
        %v1128 = vunpack.c.h.bf16 %v1114
        %v1129 = vunpack.c.l.bf16 %v1115
        %v1130 = vunpack.c.h.bf16 %v1115
        %v1131 = vunpack.c.l.bf16 %v1116
        %v1132 = vunpack.c.h.bf16 %v1116
        %v1133 = vunpack.c.l.bf16 %v1117
        %v1134 = vunpack.c.h.bf16 %v1117
        %v1135 = vunpack.c.l.bf16 %v1118
        %v1136 = vunpack.c.h.bf16 %v1118
        %v1137 = vunpack.c.l.bf16 %v1119
        %v1138 = vunpack.c.h.bf16 %v1119
        %v1139 = vunpack.c.l.bf16 %v1120
        %v1140 = vunpack.c.h.bf16 %v1120
        %v1141 = vmul.f32 %v339, %v301
        %v1142 = vmul.f32 %v339, %v302
        %v1143 = vmul.f32 %v339, %v303
        %v1144 = vmul.f32 %v339, %v304
        %v1145 = vmul.f32 %v1141, %v289
        %v1146 = vmul.f32 %v1142, %v290
        %v1147 = vmul.f32 %v1143, %v291
        %v1148 = vmul.f32 %v1144, %v292
        %v1149 = vmul.f32 %v1141, %v293
        %v1150 = vmul.f32 %v1142, %v294
        %v1151 = vmul.f32 %v1143, %v295
        %v1152 = vmul.f32 %v1144, %v296
        %v1153 = vmul.f32 %v1141, %v297
        %v1154 = vmul.f32 %v1142, %v298
        %v1155 = vmul.f32 %v1143, %v299
        %v1156 = vmul.f32 %v1144, %v300
        %v1157 = vmul.f32 %v1141, %v301
        %v1158 = vmul.f32 %v1142, %v302
        %v1159 = vmul.f32 %v1143, %v303
        %v1160 = vmul.f32 %v1144, %v304
        %v1161 = vmul.f32 %v1141, %v305
        %v1162 = vmul.f32 %v1142, %v306
        %v1163 = vmul.f32 %v1143, %v307
        %v1164 = vmul.f32 %v1144, %v308
        %v1165 = vadd.f32 %v1145, %v1121
        %v1166 = vadd.f32 %v1146, %v1122
        %v1167 = vadd.f32 %v1147, %v1123
        %v1168 = vadd.f32 %v1148, %v1124
        %v1169 = vadd.f32 %v1149, %v1125
        %v1170 = vadd.f32 %v1150, %v1126
        %v1171 = vadd.f32 %v1151, %v1127
        %v1172 = vadd.f32 %v1152, %v1128
        %v1173 = vadd.f32 %v1153, %v1129
        %v1174 = vadd.f32 %v1154, %v1130
        %v1175 = vadd.f32 %v1155, %v1131
        %v1176 = vadd.f32 %v1156, %v1132
        %v1177 = vadd.f32 %v1157, %v1133
        %v1178 = vadd.f32 %v1158, %v1134
        %v1179 = vadd.f32 %v1159, %v1135
        %v1180 = vadd.f32 %v1160, %v1136
        %v1181 = vadd.f32 %v1161, %v1137
        %v1182 = vadd.f32 %v1162, %v1138
        %v1183 = vadd.f32 %v1163, %v1139
        %v1184 = vadd.f32 %v1164, %v1140
        %v1185 = vmax.f32 %v1165, %v1169
        %v1186 = vmax.f32 %v1185, %v1173
        %v1187 = vmax.f32 %v1186, %v1177
        %v1188 = vmax.f32 %v1187, %v1181
        %v1189 = vmax.f32 %v1166, %v1170
        %v1190 = vmax.f32 %v1189, %v1174
        %v1191 = vmax.f32 %v1190, %v1178
        %v1192 = vmax.f32 %v1191, %v1182
        %v1193 = vmax.f32 %v1167, %v1171
        %v1194 = vmax.f32 %v1193, %v1175
        %v1195 = vmax.f32 %v1194, %v1179
        %v1196 = vmax.f32 %v1195, %v1183
        %v1197 = vmax.f32 %v1168, %v1172
        %v1198 = vmax.f32 %v1197, %v1176
        %v1199 = vmax.f32 %v1198, %v1180
        %v1200 = vmax.f32 %v1199, %v1184
        %v1201 = vsub.f32 %v1165, %v1188
        %v1202 = vsub.f32 %v1166, %v1192
        %v1203 = vsub.f32 %v1167, %v1196
        %v1204 = vsub.f32 %v1168, %v1200
        %v1205 = vsub.f32 %v1169, %v1188
        %v1206 = vsub.f32 %v1170, %v1192
        %v1207 = vsub.f32 %v1171, %v1196
        %v1208 = vsub.f32 %v1172, %v1200
        %v1209 = vsub.f32 %v1173, %v1188
        %v1210 = vsub.f32 %v1174, %v1192
        %v1211 = vsub.f32 %v1175, %v1196
        %v1212 = vsub.f32 %v1176, %v1200
        %v1213 = vsub.f32 %v1177, %v1188
        %v1214 = vsub.f32 %v1178, %v1192
        %v1215 = vsub.f32 %v1179, %v1196
        %v1216 = vsub.f32 %v1180, %v1200
        %v1217 = vsub.f32 %v1181, %v1188
        %v1218 = vsub.f32 %v1182, %v1192
        %v1219 = vsub.f32 %v1183, %v1196
        %v1220 = vsub.f32 %v1184, %v1200
        %v1221 = vmul.f32 %v1201, 1.442695
        %v1222 = vpow.pop %v1221
        %v1223 = vmul.f32 %v1202, 1.442695
        %v1224 = vpow.pop %v1223
        %v1225 = vmul.f32 %v1203, 1.442695
        %v1226 = vpow.pop %v1225
        %v1227 = vmul.f32 %v1204, 1.442695
        %v1228 = vpow.pop %v1227
        %v1229 = vmul.f32 %v1205, 1.442695
        %v1230 = vpow.pop %v1229
        %v1231 = vmul.f32 %v1206, 1.442695
        %v1232 = vpow.pop %v1231
        %v1233 = vmul.f32 %v1207, 1.442695
        %v1234 = vpow.pop %v1233
        %v1235 = vmul.f32 %v1208, 1.442695
        %v1236 = vpow.pop %v1235
        %v1237 = vmul.f32 %v1209, 1.442695
        %v1238 = vpow.pop %v1237
        %v1239 = vmul.f32 %v1210, 1.442695
        %v1240 = vpow.pop %v1239
        %v1241 = vmul.f32 %v1211, 1.442695
        %v1242 = vpow.pop %v1241
        %v1243 = vmul.f32 %v1212, 1.442695
        %v1244 = vpow.pop %v1243
        %v1245 = vmul.f32 %v1213, 1.442695
        %v1246 = vpow.pop %v1245
        %v1247 = vmul.f32 %v1214, 1.442695
        %v1248 = vpow.pop %v1247
        %v1249 = vmul.f32 %v1215, 1.442695
        %v1250 = vpow.pop %v1249
        %v1251 = vmul.f32 %v1216, 1.442695
        %v1252 = vpow.pop %v1251
        %v1253 = vmul.f32 %v1217, 1.442695
        %v1254 = vpow.pop %v1253
        %v1255 = vmul.f32 %v1218, 1.442695
        %v1256 = vpow.pop %v1255
        %v1257 = vmul.f32 %v1219, 1.442695
        %v1258 = vpow.pop %v1257
        %v1259 = vmul.f32 %v1220, 1.442695
        %v1260 = vpow.pop %v1259
        %v1261 = vadd.f32 %v1222, %v1230
        %v1262 = vadd.f32 %v1261, %v1238
        %v1263 = vadd.f32 %v1262, %v1246
        %v1264 = vadd.f32 %v1263, %v1254
        %v1265 = vadd.f32 %v1224, %v1232
        %v1266 = vadd.f32 %v1265, %v1240
        %v1267 = vadd.f32 %v1266, %v1248
        %v1268 = vadd.f32 %v1267, %v1256
        %v1269 = vadd.f32 %v1226, %v1234
        %v1270 = vadd.f32 %v1269, %v1242
        %v1271 = vadd.f32 %v1270, %v1250
        %v1272 = vadd.f32 %v1271, %v1258
        %v1273 = vadd.f32 %v1228, %v1236
        %v1274 = vadd.f32 %v1273, %v1244
        %v1275 = vadd.f32 %v1274, %v1252
        %v1276 = vadd.f32 %v1275, %v1260
        %v1277 = vmul.f32 %v1222, %v289
        %v1278 = vmul.f32 %v1224, %v290
        %v1279 = vmul.f32 %v1226, %v291
        %v1280 = vmul.f32 %v1228, %v292
        %v1281 = vmul.f32 %v1230, %v293
        %v1282 = vmul.f32 %v1232, %v294
        %v1283 = vmul.f32 %v1234, %v295
        %v1284 = vmul.f32 %v1236, %v296
        %v1285 = vmul.f32 %v1238, %v297
        %v1286 = vmul.f32 %v1240, %v298
        %v1287 = vmul.f32 %v1242, %v299
        %v1288 = vmul.f32 %v1244, %v300
        %v1289 = vmul.f32 %v1246, %v301
        %v1290 = vmul.f32 %v1248, %v302
        %v1291 = vmul.f32 %v1250, %v303
        %v1292 = vmul.f32 %v1252, %v304
        %v1293 = vmul.f32 %v1254, %v305
        %v1294 = vmul.f32 %v1256, %v306
        %v1295 = vmul.f32 %v1258, %v307
        %v1296 = vmul.f32 %v1260, %v308
        %v1297 = vadd.f32 %v1277, %v1281
        %v1298 = vadd.f32 %v1297, %v1285
        %v1299 = vadd.f32 %v1298, %v1289
        %v1300 = vadd.f32 %v1299, %v1293
        %v1301 = vadd.f32 %v1278, %v1282
        %v1302 = vadd.f32 %v1301, %v1286
        %v1303 = vadd.f32 %v1302, %v1290
        %v1304 = vadd.f32 %v1303, %v1294
        %v1305 = vadd.f32 %v1279, %v1283
        %v1306 = vadd.f32 %v1305, %v1287
        %v1307 = vadd.f32 %v1306, %v1291
        %v1308 = vadd.f32 %v1307, %v1295
        %v1309 = vadd.f32 %v1280, %v1284
        %v1310 = vadd.f32 %v1309, %v1288
        %v1311 = vadd.f32 %v1310, %v1292
        %v1312 = vadd.f32 %v1311, %v1296
        %v1313 = vrcp.pop %v1264
        %v1314 = vmul.f32 %v1264, %v1313
        %v1315 = vsub.f32 1.0, %v1314
        %v1316 = vmul.f32 %v1313, %v1315
        %v1317 = vadd.f32 %v1313, %v1316
        %vm1318 = vweird.f32 %v1264
        %vm1319 = vweird.f32 %v1313
        %vm1320 = vmor %vm1318, %vm1319
        %v1321 = vsel %vm1320, %v1313, %v1317
        %v1322 = vand.u32 2147483647, %v1264
        %vm1323 = vcmp.eq.f32.partialorder %v1322, 8.507059e+37
        %v1324 = vand.u32 %v1264, 2147483648
        %v1325 = vor.u32 1.1754944e-38, %v1324
        %v1326 = vsel %vm1323, %v1325, %v1321
        %v1327 = vmul.f32 %v1300, %v1326
        %v1328 = vrcp.pop %v1268
        %v1329 = vmul.f32 %v1268, %v1328
        %v1330 = vsub.f32 1.0, %v1329
        %v1331 = vmul.f32 %v1328, %v1330
        %v1332 = vadd.f32 %v1328, %v1331
        %vm1333 = vweird.f32 %v1268
        %vm1334 = vweird.f32 %v1328
        %vm1335 = vmor %vm1333, %vm1334
        %v1336 = vsel %vm1335, %v1328, %v1332
        %v1337 = vand.u32 2147483647, %v1268
        %vm1338 = vcmp.eq.f32.partialorder %v1337, 8.507059e+37
        %v1339 = vand.u32 %v1268, 2147483648
        %v1340 = vor.u32 1.1754944e-38, %v1339
        %v1341 = vsel %vm1338, %v1340, %v1336
        %v1342 = vmul.f32 %v1304, %v1341
        %v1343 = vrcp.pop %v1272
        %v1344 = vmul.f32 %v1272, %v1343
        %v1345 = vsub.f32 1.0, %v1344
        %v1346 = vmul.f32 %v1343, %v1345
        %v1347 = vadd.f32 %v1343, %v1346
        %vm1348 = vweird.f32 %v1272
        %vm1349 = vweird.f32 %v1343
        %vm1350 = vmor %vm1348, %vm1349
        %v1351 = vsel %vm1350, %v1343, %v1347
        %v1352 = vand.u32 2147483647, %v1272
        %vm1353 = vcmp.eq.f32.partialorder %v1352, 8.507059e+37
        %v1354 = vand.u32 %v1272, 2147483648
        %v1355 = vor.u32 1.1754944e-38, %v1354
        %v1356 = vsel %vm1353, %v1355, %v1351
        %v1357 = vmul.f32 %v1308, %v1356
        %v1358 = vrcp.pop %v1276
        %v1359 = vmul.f32 %v1276, %v1358
        %v1360 = vsub.f32 1.0, %v1359
        %v1361 = vmul.f32 %v1358, %v1360
        %v1362 = vadd.f32 %v1358, %v1361
        %vm1363 = vweird.f32 %v1276
        %vm1364 = vweird.f32 %v1358
        %vm1365 = vmor %vm1363, %vm1364
        %v1366 = vsel %vm1365, %v1358, %v1362
        %v1367 = vand.u32 2147483647, %v1276
        %vm1368 = vcmp.eq.f32.partialorder %v1367, 8.507059e+37
        %v1369 = vand.u32 %v1276, 2147483648
        %v1370 = vor.u32 1.1754944e-38, %v1369
        %v1371 = vsel %vm1368, %v1370, %v1366
        %v1372 = vmul.f32 %v1312, %v1371
        %1373 = vst [vmem:[#allocation2 + $0x60] sm:$0xff] %v1327
        %1374 = vst [vmem:[#allocation2 + $0x68] sm:$0xff] %v1342
        %1375 = vst [vmem:[#allocation2 + $0x70] sm:$0xff] %v1357
        %1376 = vst [vmem:[#allocation2 + $0x78] sm:$0xff] %v1372
        %s1377 = scalar_lea.vmem %s245, 320 [#allocation4]
        %v1378 = vld [vmem:[%s1377] sm:$0xff]
        %v1379 = vld [vmem:[%s1377 + $0x8] sm:$0xff]
        %v1380 = vld [vmem:[%s1377 + $0x10] sm:$0xff]
        %v1381 = vld [vmem:[%s1377 + $0x18] sm:$0xff]
        %v1382 = vld [vmem:[%s1377 + $0x20] sm:$0xff]
        %v1383 = vld [vmem:[%s1377 + $0x28] sm:$0xff]
        %v1384 = vld [vmem:[%s1377 + $0x30] sm:$0xff]
        %v1385 = vld [vmem:[%s1377 + $0x38] sm:$0xff]
        %v1386 = vld [vmem:[%s1377 + $0x40] sm:$0xff]
        %v1387 = vld [vmem:[%s1377 + $0x48] sm:$0xff]
        %v1388 = vunpack.c.l.bf16 %v1378
        %v1389 = vunpack.c.h.bf16 %v1378
        %v1390 = vunpack.c.l.bf16 %v1379
        %v1391 = vunpack.c.h.bf16 %v1379
        %v1392 = vunpack.c.l.bf16 %v1380
        %v1393 = vunpack.c.h.bf16 %v1380
        %v1394 = vunpack.c.l.bf16 %v1381
        %v1395 = vunpack.c.h.bf16 %v1381
        %v1396 = vunpack.c.l.bf16 %v1382
        %v1397 = vunpack.c.h.bf16 %v1382
        %v1398 = vunpack.c.l.bf16 %v1383
        %v1399 = vunpack.c.h.bf16 %v1383
        %v1400 = vunpack.c.l.bf16 %v1384
        %v1401 = vunpack.c.h.bf16 %v1384
        %v1402 = vunpack.c.l.bf16 %v1385
        %v1403 = vunpack.c.h.bf16 %v1385
        %v1404 = vunpack.c.l.bf16 %v1386
        %v1405 = vunpack.c.h.bf16 %v1386
        %v1406 = vunpack.c.l.bf16 %v1387
        %v1407 = vunpack.c.h.bf16 %v1387
        %v1408 = vmul.f32 %v339, %v305
        %v1409 = vmul.f32 %v339, %v306
        %v1410 = vmul.f32 %v339, %v307
        %v1411 = vmul.f32 %v339, %v308
        %v1412 = vmul.f32 %v1408, %v289
        %v1413 = vmul.f32 %v1409, %v290
        %v1414 = vmul.f32 %v1410, %v291
        %v1415 = vmul.f32 %v1411, %v292
        %v1416 = vmul.f32 %v1408, %v293
        %v1417 = vmul.f32 %v1409, %v294
        %v1418 = vmul.f32 %v1410, %v295
        %v1419 = vmul.f32 %v1411, %v296
        %v1420 = vmul.f32 %v1408, %v297
        %v1421 = vmul.f32 %v1409, %v298
        %v1422 = vmul.f32 %v1410, %v299
        %v1423 = vmul.f32 %v1411, %v300
        %v1424 = vmul.f32 %v1408, %v301
        %v1425 = vmul.f32 %v1409, %v302
        %v1426 = vmul.f32 %v1410, %v303
        %v1427 = vmul.f32 %v1411, %v304
        %v1428 = vmul.f32 %v1408, %v305
        %v1429 = vmul.f32 %v1409, %v306
        %v1430 = vmul.f32 %v1410, %v307
        %v1431 = vmul.f32 %v1411, %v308
        %v1432 = vadd.f32 %v1412, %v1388
        %v1433 = vadd.f32 %v1413, %v1389
        %v1434 = vadd.f32 %v1414, %v1390
        %v1435 = vadd.f32 %v1415, %v1391
        %v1436 = vadd.f32 %v1416, %v1392
        %v1437 = vadd.f32 %v1417, %v1393
        %v1438 = vadd.f32 %v1418, %v1394
        %v1439 = vadd.f32 %v1419, %v1395
        %v1440 = vadd.f32 %v1420, %v1396
        %v1441 = vadd.f32 %v1421, %v1397
        %v1442 = vadd.f32 %v1422, %v1398
        %v1443 = vadd.f32 %v1423, %v1399
        %v1444 = vadd.f32 %v1424, %v1400
        %v1445 = vadd.f32 %v1425, %v1401
        %v1446 = vadd.f32 %v1426, %v1402
        %v1447 = vadd.f32 %v1427, %v1403
        %v1448 = vadd.f32 %v1428, %v1404
        %v1449 = vadd.f32 %v1429, %v1405
        %v1450 = vadd.f32 %v1430, %v1406
        %v1451 = vadd.f32 %v1431, %v1407
        %v1452 = vmax.f32 %v1432, %v1436
        %v1453 = vmax.f32 %v1452, %v1440
        %v1454 = vmax.f32 %v1453, %v1444
        %v1455 = vmax.f32 %v1454, %v1448
        %v1456 = vmax.f32 %v1433, %v1437
        %v1457 = vmax.f32 %v1456, %v1441
        %v1458 = vmax.f32 %v1457, %v1445
        %v1459 = vmax.f32 %v1458, %v1449
        %v1460 = vmax.f32 %v1434, %v1438
        %v1461 = vmax.f32 %v1460, %v1442
        %v1462 = vmax.f32 %v1461, %v1446
        %v1463 = vmax.f32 %v1462, %v1450
        %v1464 = vmax.f32 %v1435, %v1439
        %v1465 = vmax.f32 %v1464, %v1443
        %v1466 = vmax.f32 %v1465, %v1447
        %v1467 = vmax.f32 %v1466, %v1451
        %v1468 = vsub.f32 %v1432, %v1455
        %v1469 = vsub.f32 %v1433, %v1459
        %v1470 = vsub.f32 %v1434, %v1463
        %v1471 = vsub.f32 %v1435, %v1467
        %v1472 = vsub.f32 %v1436, %v1455
        %v1473 = vsub.f32 %v1437, %v1459
        %v1474 = vsub.f32 %v1438, %v1463
        %v1475 = vsub.f32 %v1439, %v1467
        %v1476 = vsub.f32 %v1440, %v1455
        %v1477 = vsub.f32 %v1441, %v1459
        %v1478 = vsub.f32 %v1442, %v1463
        %v1479 = vsub.f32 %v1443, %v1467
        %v1480 = vsub.f32 %v1444, %v1455
        %v1481 = vsub.f32 %v1445, %v1459
        %v1482 = vsub.f32 %v1446, %v1463
        %v1483 = vsub.f32 %v1447, %v1467
        %v1484 = vsub.f32 %v1448, %v1455
        %v1485 = vsub.f32 %v1449, %v1459
        %v1486 = vsub.f32 %v1450, %v1463
        %v1487 = vsub.f32 %v1451, %v1467
        %v1488 = vmul.f32 %v1468, 1.442695
        %v1489 = vpow.pop %v1488
        %v1490 = vmul.f32 %v1469, 1.442695
        %v1491 = vpow.pop %v1490
        %v1492 = vmul.f32 %v1470, 1.442695
        %v1493 = vpow.pop %v1492
        %v1494 = vmul.f32 %v1471, 1.442695
        %v1495 = vpow.pop %v1494
        %v1496 = vmul.f32 %v1472, 1.442695
        %v1497 = vpow.pop %v1496
        %v1498 = vmul.f32 %v1473, 1.442695
        %v1499 = vpow.pop %v1498
        %v1500 = vmul.f32 %v1474, 1.442695
        %v1501 = vpow.pop %v1500
        %v1502 = vmul.f32 %v1475, 1.442695
        %v1503 = vpow.pop %v1502
        %v1504 = vmul.f32 %v1476, 1.442695
        %v1505 = vpow.pop %v1504
        %v1506 = vmul.f32 %v1477, 1.442695
        %v1507 = vpow.pop %v1506
        %v1508 = vmul.f32 %v1478, 1.442695
        %v1509 = vpow.pop %v1508
        %v1510 = vmul.f32 %v1479, 1.442695
        %v1511 = vpow.pop %v1510
        %v1512 = vmul.f32 %v1480, 1.442695
        %v1513 = vpow.pop %v1512
        %v1514 = vmul.f32 %v1481, 1.442695
        %v1515 = vpow.pop %v1514
        %v1516 = vmul.f32 %v1482, 1.442695
        %v1517 = vpow.pop %v1516
        %v1518 = vmul.f32 %v1483, 1.442695
        %v1519 = vpow.pop %v1518
        %v1520 = vmul.f32 %v1484, 1.442695
        %v1521 = vpow.pop %v1520
        %v1522 = vmul.f32 %v1485, 1.442695
        %v1523 = vpow.pop %v1522
        %v1524 = vmul.f32 %v1486, 1.442695
        %v1525 = vpow.pop %v1524
        %v1526 = vmul.f32 %v1487, 1.442695
        %v1527 = vpow.pop %v1526
        %v1528 = vadd.f32 %v1489, %v1497
        %v1529 = vadd.f32 %v1528, %v1505
        %v1530 = vadd.f32 %v1529, %v1513
        %v1531 = vadd.f32 %v1530, %v1521
        %v1532 = vadd.f32 %v1491, %v1499
        %v1533 = vadd.f32 %v1532, %v1507
        %v1534 = vadd.f32 %v1533, %v1515
        %v1535 = vadd.f32 %v1534, %v1523
        %v1536 = vadd.f32 %v1493, %v1501
        %v1537 = vadd.f32 %v1536, %v1509
        %v1538 = vadd.f32 %v1537, %v1517
        %v1539 = vadd.f32 %v1538, %v1525
        %v1540 = vadd.f32 %v1495, %v1503
        %v1541 = vadd.f32 %v1540, %v1511
        %v1542 = vadd.f32 %v1541, %v1519
        %v1543 = vadd.f32 %v1542, %v1527
        %v1544 = vmul.f32 %v1489, %v289
        %v1545 = vmul.f32 %v1491, %v290
        %v1546 = vmul.f32 %v1493, %v291
        %v1547 = vmul.f32 %v1495, %v292
        %v1548 = vmul.f32 %v1497, %v293
        %v1549 = vmul.f32 %v1499, %v294
        %v1550 = vmul.f32 %v1501, %v295
        %v1551 = vmul.f32 %v1503, %v296
        %v1552 = vmul.f32 %v1505, %v297
        %v1553 = vmul.f32 %v1507, %v298
        %v1554 = vmul.f32 %v1509, %v299
        %v1555 = vmul.f32 %v1511, %v300
        %v1556 = vmul.f32 %v1513, %v301
        %v1557 = vmul.f32 %v1515, %v302
        %v1558 = vmul.f32 %v1517, %v303
        %v1559 = vmul.f32 %v1519, %v304
        %v1560 = vmul.f32 %v1521, %v305
        %v1561 = vmul.f32 %v1523, %v306
        %v1562 = vmul.f32 %v1525, %v307
        %v1563 = vmul.f32 %v1527, %v308
        %v1564 = vadd.f32 %v1544, %v1548
        %v1565 = vadd.f32 %v1564, %v1552
        %v1566 = vadd.f32 %v1565, %v1556
        %v1567 = vadd.f32 %v1566, %v1560
        %v1568 = vadd.f32 %v1545, %v1549
        %v1569 = vadd.f32 %v1568, %v1553
        %v1570 = vadd.f32 %v1569, %v1557
        %v1571 = vadd.f32 %v1570, %v1561
        %v1572 = vadd.f32 %v1546, %v1550
        %v1573 = vadd.f32 %v1572, %v1554
        %v1574 = vadd.f32 %v1573, %v1558
        %v1575 = vadd.f32 %v1574, %v1562
        %v1576 = vadd.f32 %v1547, %v1551
        %v1577 = vadd.f32 %v1576, %v1555
        %v1578 = vadd.f32 %v1577, %v1559
        %v1579 = vadd.f32 %v1578, %v1563
        %v1580 = vrcp.pop %v1531
        %v1581 = vmul.f32 %v1531, %v1580
        %v1582 = vsub.f32 1.0, %v1581
        %v1583 = vmul.f32 %v1580, %v1582
        %v1584 = vadd.f32 %v1580, %v1583
        %vm1585 = vweird.f32 %v1531
        %vm1586 = vweird.f32 %v1580
        %vm1587 = vmor %vm1585, %vm1586
        %v1588 = vsel %vm1587, %v1580, %v1584
        %v1589 = vand.u32 2147483647, %v1531
        %vm1590 = vcmp.eq.f32.partialorder %v1589, 8.507059e+37
        %v1591 = vand.u32 %v1531, 2147483648
        %v1592 = vor.u32 1.1754944e-38, %v1591
        %v1593 = vsel %vm1590, %v1592, %v1588
        %v1594 = vmul.f32 %v1567, %v1593
        %v1595 = vrcp.pop %v1535
        %v1596 = vmul.f32 %v1535, %v1595
        %v1597 = vsub.f32 1.0, %v1596
        %v1598 = vmul.f32 %v1595, %v1597
        %v1599 = vadd.f32 %v1595, %v1598
        %vm1600 = vweird.f32 %v1535
        %vm1601 = vweird.f32 %v1595
        %vm1602 = vmor %vm1600, %vm1601
        %v1603 = vsel %vm1602, %v1595, %v1599
        %v1604 = vand.u32 2147483647, %v1535
        %vm1605 = vcmp.eq.f32.partialorder %v1604, 8.507059e+37
        %v1606 = vand.u32 %v1535, 2147483648
        %v1607 = vor.u32 1.1754944e-38, %v1606
        %v1608 = vsel %vm1605, %v1607, %v1603
        %v1609 = vmul.f32 %v1571, %v1608
        %v1610 = vrcp.pop %v1539
        %v1611 = vmul.f32 %v1539, %v1610
        %v1612 = vsub.f32 1.0, %v1611
        %v1613 = vmul.f32 %v1610, %v1612
        %v1614 = vadd.f32 %v1610, %v1613
        %vm1615 = vweird.f32 %v1539
        %vm1616 = vweird.f32 %v1610
        %vm1617 = vmor %vm1615, %vm1616
        %v1618 = vsel %vm1617, %v1610, %v1614
        %v1619 = vand.u32 2147483647, %v1539
        %vm1620 = vcmp.eq.f32.partialorder %v1619, 8.507059e+37
        %v1621 = vand.u32 %v1539, 2147483648
        %v1622 = vor.u32 1.1754944e-38, %v1621
        %v1623 = vsel %vm1620, %v1622, %v1618
        %v1624 = vmul.f32 %v1575, %v1623
        %v1625 = vrcp.pop %v1543
        %v1626 = vmul.f32 %v1543, %v1625
        %v1627 = vsub.f32 1.0, %v1626
        %v1628 = vmul.f32 %v1625, %v1627
        %v1629 = vadd.f32 %v1625, %v1628
        %vm1630 = vweird.f32 %v1543
        %vm1631 = vweird.f32 %v1625
        %vm1632 = vmor %vm1630, %vm1631
        %v1633 = vsel %vm1632, %v1625, %v1629
        %v1634 = vand.u32 2147483647, %v1543
        %vm1635 = vcmp.eq.f32.partialorder %v1634, 8.507059e+37
        %v1636 = vand.u32 %v1543, 2147483648
        %v1637 = vor.u32 1.1754944e-38, %v1636
        %v1638 = vsel %vm1635, %v1637, %v1633
        %v1639 = vmul.f32 %v1579, %v1638
        %1640 = vst [vmem:[#allocation2 + $0x80] sm:$0xff] %v1594
        %1641 = vst [vmem:[#allocation2 + $0x88] sm:$0xff] %v1609
        %1642 = vst [vmem:[#allocation2 + $0x90] sm:$0xff] %v1624
        %1643 = vst [vmem:[#allocation2 + $0x98] sm:$0xff] %v1639
        %v1644 = vld [vmem:[%s3] sm:$0xff]
        %v1645 = vld [vmem:[#allocation2] sm:$0xff]
        %v1646 = vld [vmem:[#allocation2 + $0x8] sm:$0xff]
        %v1647 = vld [vmem:[#allocation2 + $0x10] sm:$0xff]
        %v1648 = vld [vmem:[#allocation2 + $0x18] sm:$0xff]
        %v1649 = vld [vmem:[#allocation2 + $0x20] sm:$0xff]
        %v1650 = vld [vmem:[#allocation2 + $0x28] sm:$0xff]
        %v1651 = vld [vmem:[#allocation2 + $0x30] sm:$0xff]
        %v1652 = vld [vmem:[#allocation2 + $0x38] sm:$0xff]
        %v1653 = vld [vmem:[#allocation2 + $0x40] sm:$0xff]
        %v1654 = vld [vmem:[#allocation2 + $0x48] sm:$0xff]
        %v1655 = vld [vmem:[#allocation2 + $0x50] sm:$0xff]
        %v1656 = vld [vmem:[#allocation2 + $0x58] sm:$0xff]
        %v1657 = vld [vmem:[#allocation2 + $0x60] sm:$0xff]
        %v1658 = vld [vmem:[#allocation2 + $0x68] sm:$0xff]
        %v1659 = vld [vmem:[#allocation2 + $0x70] sm:$0xff]
        %v1660 = vld [vmem:[#allocation2 + $0x78] sm:$0xff]
        %v1661 = vld [vmem:[#allocation2 + $0x80] sm:$0xff]
        %v1662 = vld [vmem:[#allocation2 + $0x88] sm:$0xff]
        %v1663 = vld [vmem:[#allocation2 + $0x90] sm:$0xff]
        %v1664 = vld [vmem:[#allocation2 + $0x98] sm:$0xff]
        %vm1665 = vcmask 64512
        %v1667 = vsel %vm1665, %v1644, 0
        %1669 = vmatpush.msra.mxu0 0.0
        %1670 = vmatpush.msra.mxu0 0.0
        %1671 = vmatpush.msra.mxu0 0.0
        %1672 = vmatpush.msra.mxu0 0.0
        %1673 = vmatpush.msra.mxu0 0.0
        %1674 = vmatpush.msra.mxu0 0.0
        %1675 = vmatpush.msra.mxu0 0.0
        %1676 = vmatpush.msra.mxu0 0.0
        %1677 = vmatpush.msra.mxu0 0.0
        %1678 = vmatpush.msra.mxu0 0.0
        %1679 = vmatpush.msra.mxu0 0.0
        %1680 = vmatpush.msra.mxu0 0.0
        %1681 = vmatpush.msra.mxu0 0.0
        %1682 = vmatpush.msra.mxu0 0.0
        %1683 = vmatpush.msra.mxu0 0.0
        %1684 = vmatpush.msra.mxu0 %v1645
        %1685 = vmatmul.f32.gmra.mxu0 %v1667
        %v1686 = vpop.f32.mrf.mxu0
        %v1687 = vadd.f32 0.0, %v1686
        %1688 = vdwg.mxu0
        %1689 = vmatpush.msra.mxu0 0.0
        %1690 = vmatpush.msra.mxu0 0.0
        %1691 = vmatpush.msra.mxu0 0.0
        %1692 = vmatpush.msra.mxu0 0.0
        %1693 = vmatpush.msra.mxu0 0.0
        %1694 = vmatpush.msra.mxu0 0.0
        %1695 = vmatpush.msra.mxu0 0.0
        %1696 = vmatpush.msra.mxu0 0.0
        %1697 = vmatpush.msra.mxu0 0.0
        %1698 = vmatpush.msra.mxu0 0.0
        %1699 = vmatpush.msra.mxu0 0.0
        %1700 = vmatpush.msra.mxu0 0.0
        %1701 = vmatpush.msra.mxu0 0.0
        %1702 = vmatpush.msra.mxu0 0.0
        %1703 = vmatpush.msra.mxu0 0.0
        %1704 = vmatpush.msra.mxu0 %v1646
        %1705 = vmatmul.f32.gmra.mxu0 %v1667
        %v1706 = vpop.f32.mrf.mxu0
        %v1707 = vadd.f32 0.0, %v1706
        %1708 = vdwg.mxu0
        %1709 = vmatpush.msra.mxu0 0.0
        %1710 = vmatpush.msra.mxu0 0.0
        %1711 = vmatpush.msra.mxu0 0.0
        %1712 = vmatpush.msra.mxu0 0.0
        %1713 = vmatpush.msra.mxu0 0.0
        %1714 = vmatpush.msra.mxu0 0.0
        %1715 = vmatpush.msra.mxu0 0.0
        %1716 = vmatpush.msra.mxu0 0.0
        %1717 = vmatpush.msra.mxu0 0.0
        %1718 = vmatpush.msra.mxu0 0.0
        %1719 = vmatpush.msra.mxu0 0.0
        %1720 = vmatpush.msra.mxu0 0.0
        %1721 = vmatpush.msra.mxu0 0.0
        %1722 = vmatpush.msra.mxu0 0.0
        %1723 = vmatpush.msra.mxu0 0.0
        %1724 = vmatpush.msra.mxu0 %v1647
        %1725 = vmatmul.f32.gmra.mxu0 %v1667
        %v1726 = vpop.f32.mrf.mxu0
        %v1727 = vadd.f32 0.0, %v1726
        %1728 = vdwg.mxu0
        %1729 = vmatpush.msra.mxu0 0.0
        %1730 = vmatpush.msra.mxu0 0.0
        %1731 = vmatpush.msra.mxu0 0.0
        %1732 = vmatpush.msra.mxu0 0.0
        %1733 = vmatpush.msra.mxu0 0.0
        %1734 = vmatpush.msra.mxu0 0.0
        %1735 = vmatpush.msra.mxu0 0.0
        %1736 = vmatpush.msra.mxu0 0.0
        %1737 = vmatpush.msra.mxu0 0.0
        %1738 = vmatpush.msra.mxu0 0.0
        %1739 = vmatpush.msra.mxu0 0.0
        %1740 = vmatpush.msra.mxu0 0.0
        %1741 = vmatpush.msra.mxu0 0.0
        %1742 = vmatpush.msra.mxu0 0.0
        %1743 = vmatpush.msra.mxu0 0.0
        %1744 = vmatpush.msra.mxu0 %v1648
        %1745 = vmatmul.f32.gmra.mxu0 %v1667
        %v1746 = vpop.f32.mrf.mxu0
        %v1747 = vadd.f32 0.0, %v1746
        %1748 = vdwg.mxu0
        %1749 = vmatpush.msra.mxu0 0.0
        %1750 = vmatpush.msra.mxu0 0.0
        %1751 = vmatpush.msra.mxu0 0.0
        %1752 = vmatpush.msra.mxu0 0.0
        %1753 = vmatpush.msra.mxu0 0.0
        %1754 = vmatpush.msra.mxu0 0.0
        %1755 = vmatpush.msra.mxu0 0.0
        %1756 = vmatpush.msra.mxu0 0.0
        %1757 = vmatpush.msra.mxu0 0.0
        %1758 = vmatpush.msra.mxu0 0.0
        %1759 = vmatpush.msra.mxu0 0.0
        %1760 = vmatpush.msra.mxu0 0.0
        %1761 = vmatpush.msra.mxu0 0.0
        %1762 = vmatpush.msra.mxu0 0.0
        %1763 = vmatpush.msra.mxu0 0.0
        %1764 = vmatpush.msra.mxu0 %v1649
        %1765 = vmatmul.f32.gmra.mxu0 %v1667
        %v1766 = vpop.f32.mrf.mxu0
        %v1767 = vadd.f32 0.0, %v1766
        %1768 = vdwg.mxu0
        %1769 = vmatpush.msra.mxu0 0.0
        %1770 = vmatpush.msra.mxu0 0.0
        %1771 = vmatpush.msra.mxu0 0.0
        %1772 = vmatpush.msra.mxu0 0.0
        %1773 = vmatpush.msra.mxu0 0.0
        %1774 = vmatpush.msra.mxu0 0.0
        %1775 = vmatpush.msra.mxu0 0.0
        %1776 = vmatpush.msra.mxu0 0.0
        %1777 = vmatpush.msra.mxu0 0.0
        %1778 = vmatpush.msra.mxu0 0.0
        %1779 = vmatpush.msra.mxu0 0.0
        %1780 = vmatpush.msra.mxu0 0.0
        %1781 = vmatpush.msra.mxu0 0.0
        %1782 = vmatpush.msra.mxu0 0.0
        %1783 = vmatpush.msra.mxu0 0.0
        %1784 = vmatpush.msra.mxu0 %v1650
        %1785 = vmatmul.f32.gmra.mxu0 %v1667
        %v1786 = vpop.f32.mrf.mxu0
        %v1787 = vadd.f32 0.0, %v1786
        %1788 = vdwg.mxu0
        %1789 = vmatpush.msra.mxu0 0.0
        %1790 = vmatpush.msra.mxu0 0.0
        %1791 = vmatpush.msra.mxu0 0.0
        %1792 = vmatpush.msra.mxu0 0.0
        %1793 = vmatpush.msra.mxu0 0.0
        %1794 = vmatpush.msra.mxu0 0.0
        %1795 = vmatpush.msra.mxu0 0.0
        %1796 = vmatpush.msra.mxu0 0.0
        %1797 = vmatpush.msra.mxu0 0.0
        %1798 = vmatpush.msra.mxu0 0.0
        %1799 = vmatpush.msra.mxu0 0.0
        %1800 = vmatpush.msra.mxu0 0.0
        %1801 = vmatpush.msra.mxu0 0.0
        %1802 = vmatpush.msra.mxu0 0.0
        %1803 = vmatpush.msra.mxu0 0.0
        %1804 = vmatpush.msra.mxu0 %v1651
        %1805 = vmatmul.f32.gmra.mxu0 %v1667
        %v1806 = vpop.f32.mrf.mxu0
        %v1807 = vadd.f32 0.0, %v1806
        %1808 = vdwg.mxu0
        %1809 = vmatpush.msra.mxu0 0.0
        %1810 = vmatpush.msra.mxu0 0.0
        %1811 = vmatpush.msra.mxu0 0.0
        %1812 = vmatpush.msra.mxu0 0.0
        %1813 = vmatpush.msra.mxu0 0.0
        %1814 = vmatpush.msra.mxu0 0.0
        %1815 = vmatpush.msra.mxu0 0.0
        %1816 = vmatpush.msra.mxu0 0.0
        %1817 = vmatpush.msra.mxu0 0.0
        %1818 = vmatpush.msra.mxu0 0.0
        %1819 = vmatpush.msra.mxu0 0.0
        %1820 = vmatpush.msra.mxu0 0.0
        %1821 = vmatpush.msra.mxu0 0.0
        %1822 = vmatpush.msra.mxu0 0.0
        %1823 = vmatpush.msra.mxu0 0.0
        %1824 = vmatpush.msra.mxu0 %v1652
        %1825 = vmatmul.f32.gmra.mxu0 %v1667
        %v1826 = vpop.f32.mrf.mxu0
        %v1827 = vadd.f32 0.0, %v1826
        %1828 = vdwg.mxu0
        %1829 = vmatpush.msra.mxu0 0.0
        %1830 = vmatpush.msra.mxu0 0.0
        %1831 = vmatpush.msra.mxu0 0.0
        %1832 = vmatpush.msra.mxu0 0.0
        %1833 = vmatpush.msra.mxu0 0.0
        %1834 = vmatpush.msra.mxu0 0.0
        %1835 = vmatpush.msra.mxu0 0.0
        %1836 = vmatpush.msra.mxu0 0.0
        %1837 = vmatpush.msra.mxu0 0.0
        %1838 = vmatpush.msra.mxu0 0.0
        %1839 = vmatpush.msra.mxu0 0.0
        %1840 = vmatpush.msra.mxu0 0.0
        %1841 = vmatpush.msra.mxu0 0.0
        %1842 = vmatpush.msra.mxu0 0.0
        %1843 = vmatpush.msra.mxu0 0.0
        %1844 = vmatpush.msra.mxu0 %v1653
        %1845 = vmatmul.f32.gmra.mxu0 %v1667
        %v1846 = vpop.f32.mrf.mxu0
        %v1847 = vadd.f32 0.0, %v1846
        %1848 = vdwg.mxu0
        %1849 = vmatpush.msra.mxu0 0.0
        %1850 = vmatpush.msra.mxu0 0.0
        %1851 = vmatpush.msra.mxu0 0.0
        %1852 = vmatpush.msra.mxu0 0.0
        %1853 = vmatpush.msra.mxu0 0.0
        %1854 = vmatpush.msra.mxu0 0.0
        %1855 = vmatpush.msra.mxu0 0.0
        %1856 = vmatpush.msra.mxu0 0.0
        %1857 = vmatpush.msra.mxu0 0.0
        %1858 = vmatpush.msra.mxu0 0.0
        %1859 = vmatpush.msra.mxu0 0.0
        %1860 = vmatpush.msra.mxu0 0.0
        %1861 = vmatpush.msra.mxu0 0.0
        %1862 = vmatpush.msra.mxu0 0.0
        %1863 = vmatpush.msra.mxu0 0.0
        %1864 = vmatpush.msra.mxu0 %v1654
        %1865 = vmatmul.f32.gmra.mxu0 %v1667
        %v1866 = vpop.f32.mrf.mxu0
        %v1867 = vadd.f32 0.0, %v1866
        %1868 = vdwg.mxu0
        %1869 = vmatpush.msra.mxu0 0.0
        %1870 = vmatpush.msra.mxu0 0.0
        %1871 = vmatpush.msra.mxu0 0.0
        %1872 = vmatpush.msra.mxu0 0.0
        %1873 = vmatpush.msra.mxu0 0.0
        %1874 = vmatpush.msra.mxu0 0.0
        %1875 = vmatpush.msra.mxu0 0.0
        %1876 = vmatpush.msra.mxu0 0.0
        %1877 = vmatpush.msra.mxu0 0.0
        %1878 = vmatpush.msra.mxu0 0.0
        %1879 = vmatpush.msra.mxu0 0.0
        %1880 = vmatpush.msra.mxu0 0.0
        %1881 = vmatpush.msra.mxu0 0.0
        %1882 = vmatpush.msra.mxu0 0.0
        %1883 = vmatpush.msra.mxu0 0.0
        %1884 = vmatpush.msra.mxu0 %v1655
        %1885 = vmatmul.f32.gmra.mxu0 %v1667
        %v1886 = vpop.f32.mrf.mxu0
        %v1887 = vadd.f32 0.0, %v1886
        %1888 = vdwg.mxu0
        %1889 = vmatpush.msra.mxu0 0.0
        %1890 = vmatpush.msra.mxu0 0.0
        %1891 = vmatpush.msra.mxu0 0.0
        %1892 = vmatpush.msra.mxu0 0.0
        %1893 = vmatpush.msra.mxu0 0.0
        %1894 = vmatpush.msra.mxu0 0.0
        %1895 = vmatpush.msra.mxu0 0.0
        %1896 = vmatpush.msra.mxu0 0.0
        %1897 = vmatpush.msra.mxu0 0.0
        %1898 = vmatpush.msra.mxu0 0.0
        %1899 = vmatpush.msra.mxu0 0.0
        %1900 = vmatpush.msra.mxu0 0.0
        %1901 = vmatpush.msra.mxu0 0.0
        %1902 = vmatpush.msra.mxu0 0.0
        %1903 = vmatpush.msra.mxu0 0.0
        %1904 = vmatpush.msra.mxu0 %v1656
        %1905 = vmatmul.f32.gmra.mxu0 %v1667
        %v1906 = vpop.f32.mrf.mxu0
        %v1907 = vadd.f32 0.0, %v1906
        %1908 = vdwg.mxu0
        %1909 = vmatpush.msra.mxu0 0.0
        %1910 = vmatpush.msra.mxu0 0.0
        %1911 = vmatpush.msra.mxu0 0.0
        %1912 = vmatpush.msra.mxu0 0.0
        %1913 = vmatpush.msra.mxu0 0.0
        %1914 = vmatpush.msra.mxu0 0.0
        %1915 = vmatpush.msra.mxu0 0.0
        %1916 = vmatpush.msra.mxu0 0.0
        %1917 = vmatpush.msra.mxu0 0.0
        %1918 = vmatpush.msra.mxu0 0.0
        %1919 = vmatpush.msra.mxu0 0.0
        %1920 = vmatpush.msra.mxu0 0.0
        %1921 = vmatpush.msra.mxu0 0.0
        %1922 = vmatpush.msra.mxu0 0.0
        %1923 = vmatpush.msra.mxu0 0.0
        %1924 = vmatpush.msra.mxu0 %v1657
        %1925 = vmatmul.f32.gmra.mxu0 %v1667
        %v1926 = vpop.f32.mrf.mxu0
        %v1927 = vadd.f32 0.0, %v1926
        %1928 = vdwg.mxu0
        %1929 = vmatpush.msra.mxu0 0.0
        %1930 = vmatpush.msra.mxu0 0.0
        %1931 = vmatpush.msra.mxu0 0.0
        %1932 = vmatpush.msra.mxu0 0.0
        %1933 = vmatpush.msra.mxu0 0.0
        %1934 = vmatpush.msra.mxu0 0.0
        %1935 = vmatpush.msra.mxu0 0.0
        %1936 = vmatpush.msra.mxu0 0.0
        %1937 = vmatpush.msra.mxu0 0.0
        %1938 = vmatpush.msra.mxu0 0.0
        %1939 = vmatpush.msra.mxu0 0.0
        %1940 = vmatpush.msra.mxu0 0.0
        %1941 = vmatpush.msra.mxu0 0.0
        %1942 = vmatpush.msra.mxu0 0.0
        %1943 = vmatpush.msra.mxu0 0.0
        %1944 = vmatpush.msra.mxu0 %v1658
        %1945 = vmatmul.f32.gmra.mxu0 %v1667
        %v1946 = vpop.f32.mrf.mxu0
        %v1947 = vadd.f32 0.0, %v1946
        %1948 = vdwg.mxu0
        %1949 = vmatpush.msra.mxu0 0.0
        %1950 = vmatpush.msra.mxu0 0.0
        %1951 = vmatpush.msra.mxu0 0.0
        %1952 = vmatpush.msra.mxu0 0.0
        %1953 = vmatpush.msra.mxu0 0.0
        %1954 = vmatpush.msra.mxu0 0.0
        %1955 = vmatpush.msra.mxu0 0.0
        %1956 = vmatpush.msra.mxu0 0.0
        %1957 = vmatpush.msra.mxu0 0.0
        %1958 = vmatpush.msra.mxu0 0.0
        %1959 = vmatpush.msra.mxu0 0.0
        %1960 = vmatpush.msra.mxu0 0.0
        %1961 = vmatpush.msra.mxu0 0.0
        %1962 = vmatpush.msra.mxu0 0.0
        %1963 = vmatpush.msra.mxu0 0.0
        %1964 = vmatpush.msra.mxu0 %v1659
        %1965 = vmatmul.f32.gmra.mxu0 %v1667
        %v1966 = vpop.f32.mrf.mxu0
        %v1967 = vadd.f32 0.0, %v1966
        %1968 = vdwg.mxu0
        %1969 = vmatpush.msra.mxu0 0.0
        %1970 = vmatpush.msra.mxu0 0.0
        %1971 = vmatpush.msra.mxu0 0.0
        %1972 = vmatpush.msra.mxu0 0.0
        %1973 = vmatpush.msra.mxu0 0.0
        %1974 = vmatpush.msra.mxu0 0.0
        %1975 = vmatpush.msra.mxu0 0.0
        %1976 = vmatpush.msra.mxu0 0.0
        %1977 = vmatpush.msra.mxu0 0.0
        %1978 = vmatpush.msra.mxu0 0.0
        %1979 = vmatpush.msra.mxu0 0.0
        %1980 = vmatpush.msra.mxu0 0.0
        %1981 = vmatpush.msra.mxu0 0.0
        %1982 = vmatpush.msra.mxu0 0.0
        %1983 = vmatpush.msra.mxu0 0.0
        %1984 = vmatpush.msra.mxu0 %v1660
        %1985 = vmatmul.f32.gmra.mxu0 %v1667
        %v1986 = vpop.f32.mrf.mxu0
        %v1987 = vadd.f32 0.0, %v1986
        %1988 = vdwg.mxu0
        %1989 = vmatpush.msra.mxu0 0.0
        %1990 = vmatpush.msra.mxu0 0.0
        %1991 = vmatpush.msra.mxu0 0.0
        %1992 = vmatpush.msra.mxu0 0.0
        %1993 = vmatpush.msra.mxu0 0.0
        %1994 = vmatpush.msra.mxu0 0.0
        %1995 = vmatpush.msra.mxu0 0.0
        %1996 = vmatpush.msra.mxu0 0.0
        %1997 = vmatpush.msra.mxu0 0.0
        %1998 = vmatpush.msra.mxu0 0.0
        %1999 = vmatpush.msra.mxu0 0.0
        %2000 = vmatpush.msra.mxu0 0.0
        %2001 = vmatpush.msra.mxu0 0.0
        %2002 = vmatpush.msra.mxu0 0.0
        %2003 = vmatpush.msra.mxu0 0.0
        %2004 = vmatpush.msra.mxu0 %v1661
        %2005 = vmatmul.f32.gmra.mxu0 %v1667
        %v2006 = vpop.f32.mrf.mxu0
        %v2007 = vadd.f32 0.0, %v2006
        %2008 = vdwg.mxu0
        %2009 = vmatpush.msra.mxu0 0.0
        %2010 = vmatpush.msra.mxu0 0.0
        %2011 = vmatpush.msra.mxu0 0.0
        %2012 = vmatpush.msra.mxu0 0.0
        %2013 = vmatpush.msra.mxu0 0.0
        %2014 = vmatpush.msra.mxu0 0.0
        %2015 = vmatpush.msra.mxu0 0.0
        %2016 = vmatpush.msra.mxu0 0.0
        %2017 = vmatpush.msra.mxu0 0.0
        %2018 = vmatpush.msra.mxu0 0.0
        %2019 = vmatpush.msra.mxu0 0.0
        %2020 = vmatpush.msra.mxu0 0.0
        %2021 = vmatpush.msra.mxu0 0.0
        %2022 = vmatpush.msra.mxu0 0.0
        %2023 = vmatpush.msra.mxu0 0.0
        %2024 = vmatpush.msra.mxu0 %v1662
        %2025 = vmatmul.f32.gmra.mxu0 %v1667
        %v2026 = vpop.f32.mrf.mxu0
        %v2027 = vadd.f32 0.0, %v2026
        %2028 = vdwg.mxu0
        %2029 = vmatpush.msra.mxu0 0.0
        %2030 = vmatpush.msra.mxu0 0.0
        %2031 = vmatpush.msra.mxu0 0.0
        %2032 = vmatpush.msra.mxu0 0.0
        %2033 = vmatpush.msra.mxu0 0.0
        %2034 = vmatpush.msra.mxu0 0.0
        %2035 = vmatpush.msra.mxu0 0.0
        %2036 = vmatpush.msra.mxu0 0.0
        %2037 = vmatpush.msra.mxu0 0.0
        %2038 = vmatpush.msra.mxu0 0.0
        %2039 = vmatpush.msra.mxu0 0.0
        %2040 = vmatpush.msra.mxu0 0.0
        %2041 = vmatpush.msra.mxu0 0.0
        %2042 = vmatpush.msra.mxu0 0.0
        %2043 = vmatpush.msra.mxu0 0.0
        %2044 = vmatpush.msra.mxu0 %v1663
        %2045 = vmatmul.f32.gmra.mxu0 %v1667
        %v2046 = vpop.f32.mrf.mxu0
        %v2047 = vadd.f32 0.0, %v2046
        %2048 = vdwg.mxu0
        %2049 = vmatpush.msra.mxu0 0.0
        %2050 = vmatpush.msra.mxu0 0.0
        %2051 = vmatpush.msra.mxu0 0.0
        %2052 = vmatpush.msra.mxu0 0.0
        %2053 = vmatpush.msra.mxu0 0.0
        %2054 = vmatpush.msra.mxu0 0.0
        %2055 = vmatpush.msra.mxu0 0.0
        %2056 = vmatpush.msra.mxu0 0.0
        %2057 = vmatpush.msra.mxu0 0.0
        %2058 = vmatpush.msra.mxu0 0.0
        %2059 = vmatpush.msra.mxu0 0.0
        %2060 = vmatpush.msra.mxu0 0.0
        %2061 = vmatpush.msra.mxu0 0.0
        %2062 = vmatpush.msra.mxu0 0.0
        %2063 = vmatpush.msra.mxu0 0.0
        %2064 = vmatpush.msra.mxu0 %v1664
        %2065 = vmatmul.f32.gmra.mxu0 %v1667
        %v2066 = vpop.f32.mrf.mxu0
        %v2067 = vadd.f32 0.0, %v2066
        %2068 = vdwg.mxu0
        %v2069 = vmax.f32 %v1687, %v1767
        %v2070 = vmax.f32 %v1707, %v1787
        %v2071 = vmax.f32 %v1727, %v1807
        %v2072 = vmax.f32 %v1747, %v1827
        %v2073 = vmax.f32 %v2069, %v1847
        %v2074 = vmax.f32 %v2070, %v1867
        %v2075 = vmax.f32 %v2071, %v1887
        %v2076 = vmax.f32 %v2072, %v1907
        %v2077 = vmax.f32 %v2073, %v1927
        %v2078 = vmax.f32 %v2074, %v1947
        %v2079 = vmax.f32 %v2075, %v1967
        %v2080 = vmax.f32 %v2076, %v1987
        %v2081 = vmax.f32 %v2077, %v2007
        %v2082 = vmax.f32 %v2078, %v2027
        %v2083 = vmax.f32 %v2079, %v2047
        %v2084 = vmax.f32 %v2080, %v2067
        %v2085 = vld [vmem:[%s4] sm:$0xff]
        %2087 = vset.pattern.permute.xlu0 0
        %2088 = vperm.xlu0 %2087, %v2085
        %v2089 = vpop.permute.xlu0 %2088
        %v2091 = vadd.f32 %v2081, %v2089
        %v2092 = vadd.f32 %v2082, %v2089
        %v2093 = vadd.f32 %v2083, %v2089
        %v2094 = vadd.f32 %v2084, %v2089
        %2095 = vst [vmem:[%s287] sm:$0xff] %v2091
        %2096 = vst [vmem:[%s287 + $0x8] sm:$0xff] %v2092
        %2097 = vst [vmem:[%s287 + $0x10] sm:$0xff] %v2093
        %2098 = vst [vmem:[%s287 + $0x18] sm:$0xff] %v2094
        %s2099 = sand.u32 %s149, 1
        %s2100 = scalar_lea.sflag [#allocation6], %s2099
        %s2101 = sand.u32 %s149, 1
        %s2102 = smul.addr %s2101, 32
        %s2103 = scalar_lea.vmem [#allocation9], %s2102
        // Predicated region
        $region49: #{tpu_custom_call.1} parent=39 // pred_check
          %p2104 = pneg %p159
        $region50: #{tpu_custom_call.1} parent=39 // pred_check_branch
          %2106 = sbr.rel (%p2104) target = $region52
        $region51: #{tpu_custom_call.1} parent=39 // pred_region
          %2108 = vsyncadd %s2100, 0
          %s2109 = smul.addr %s26, 4
          %s2110 = smul.addr %s2109, 8
          %s2111 = scalar_lea.hbm %s5, %s2110
          %s2113 = sshll.u32 %s2103, 4
          %s2114 = int_to_ptr.vmem [resolvable:$true] %s2113
          %s2115 = sshll.u32 %s2111, 4
          %s2116 = int_to_ptr.hbm [resolvable:$true] %s2115
          %2118 = dma.vmem_to_hbm [thread:$0]  %s2114, 512, %s2116, %s2100
        $region52: #{tpu_custom_call.1} parent=39 // pred_fallthru
          _
      $region40: #{tpu_custom_call.1} parent=5 // pred_fallthru
        _
      %p2119 = scmp.le.s32.totalorder 2, %s21
      // Predicated region
      $region53: #{tpu_custom_call.1} parent=5 // pred_check
        %p2120 = pneg %p2119
      $region54: #{tpu_custom_call.1} parent=5 // pred_check_branch
        %2122 = sbr.rel (%p2120) target = $region56
      $region55: #{tpu_custom_call.1} parent=5 // pred_region
        %s2123 = ssub.s32 %s21, 2
        // Predicated region
        $region57: #{tpu_custom_call.1} parent=55 // pred_check
          %p2124 = pneg %p165
        $region58: #{tpu_custom_call.1} parent=55 // pred_check_branch
          %2126 = sbr.rel (%p2124) target = $region60
        $region59: #{tpu_custom_call.1} parent=55 // pred_region
          %s2127 = sand.u32 %s150, 1
          %s2128 = scalar_lea.sflag [#allocation6], %s2127
          %s2129 = sand.u32 %s150, 1
          %s2130 = smul.addr %s2129, 32
          %s2131 = scalar_lea.vmem [#allocation9], %s2130
          %2133 = dma.done %s2128, 512
        $region60: #{tpu_custom_call.1} parent=55 // pred_fallthru
          _
      $region56: #{tpu_custom_call.1} parent=5 // pred_fallthru
        _
    $region6: #{tpu_custom_call.1} parent=1 // loop_footer
      %s25 = sadd.s32 1, %s21
    $region7: #{tpu_custom_call.1} parent=1 // loop_footer_branch
      %20 = sbr.rel target = $region3
    $region8: #{tpu_custom_call.1} parent=1 // loop_exit
      _
    %2134 = vsyncpa [#allocation5], 1
    %s2135 = scalar_lea.sflag [#allocation5], 1
    %2136 = vsyncpa %s2135, 1
    %2137 = vsyncpa [#allocation8], 1
    %s2138 = scalar_lea.sflag [#allocation8], 1
    %2139 = vsyncpa %s2138, 1
    %2140 = vsyncpa [#allocation6], 1
    %s2141 = scalar_lea.sflag [#allocation6], 1
    %2142 = vsyncpa %s2141, 1

</llo_original>
